<compile_context>
chip_gen: v7x
topology: tpu7x:2x2x1
jax: 0.10.0
libtpu: 0.0.40
codegen_flags: <defaults>
</compile_context>

<pallas_src>
import jax
import jax.numpy as jnp
from jax.experimental import pallas as pl
from jax.experimental.pallas import tpu as pltpu

IN_DIM = 40
D_MODEL = 80
D_FF = 256
N_HEADS = 2
HEAD_DIM = D_MODEL // N_HEADS
N_SPKS = 600
LN_EPS = 1e-5

DP = 128        # d_model padded to 128 lanes
DP_IN = 128     # input features padded to 128 lanes

# rows of the packed (VEC_ROWS, 3*DP) f32 vector-parameter slab
_V_PARENT_B = 0
_V_ATTN_B = 1          # out-proj bias + exact V-bias fold
_V_LN1_G = 2
_V_LN1_B = 3
_V_FF2_B = 4
_V_LN2_G = 5
_V_LN2_B = 6
_V_MASK = 7            # 1.0 for the first D_MODEL lanes (LayerNorm valid-lane mask)
_V_HMASK = 8           # + head index: 1.0 on lanes [h*40, (h+1)*40)
_V_FF1_B = 10          # lanes 0:256
_V_QKV_B = 11          # lanes 0:384 (scaled q bias | 0 | 0)
VEC_ROWS = 16


def _layer_norm(x, gamma, beta, mask):
    # x is 128-lane padded with the padded lanes exactly zero; `mask` selects the D_MODEL
    # valid lanes so mean/var use the true feature count. gamma/beta are zero in the padded
    # lanes, so the padded lanes of the output stay exactly zero.
    mu = jnp.sum(x, axis=-1, keepdims=True) * (1.0 / D_MODEL)
    diff = (x - mu) * mask
    var = jnp.sum(diff * diff, axis=-1, keepdims=True) * (1.0 / D_MODEL)
    return diff * jax.lax.rsqrt(var + LN_EPS) * gamma + beta


def encoder_kernel(x_ref, parent_w_ref, qkv_w_ref, out_w_ref, ff1_w_ref, ff2_w_ref,
                   vec_ref, out_ref):
    bt, L, _ = x_ref.shape
    M = bt * L
    cdt = parent_w_ref.dtype          # matmul operand dtype (bf16 fast path or f32 verify)

    def vrow(r, width=DP):
        return vec_ref[r:r + 1, 0:width]

    parent_b = vrow(_V_PARENT_B)
    attn_b = vrow(_V_ATTN_B)
    ln1_g, ln1_b = vrow(_V_LN1_G), vrow(_V_LN1_B)
    ff2_b = vrow(_V_FF2_B)
    ln2_g, ln2_b = vrow(_V_LN2_G), vrow(_V_LN2_B)
    ln_mask = vrow(_V_MASK)
    ff1_b = vrow(_V_FF1_B, D_FF)
    qkv_b = vrow(_V_QKV_B, 3 * DP)

    x = x_ref[...].reshape(M, DP_IN)

    # ---- prenet Linear(40 -> 80); bias added after the f32 MXU accumulation ----
    h = jnp.dot(x, parent_w_ref[...], preferred_element_type=jnp.float32) + parent_b

    # ---- self-attention: one fused (M,128)x(128,384) QKV projection (Q|K|V lanes) ----
    qkv = jnp.dot(h.astype(cdt), qkv_w_ref[...],
                  preferred_element_type=jnp.float32) + qkv_b
    qkv = qkv.astype(cdt)                           # single cast of the whole slab
    q2 = qkv[:, 0 * DP:1 * DP]
    k3 = qkv[:, 1 * DP:2 * DP].reshape(bt, L, DP)
    v2 = qkv[:, 2 * DP:3 * DP]

    # Heads live in lanes [h*40,(h+1)*40): masking Q zeroes the other head's contribution
    # to Q.K^T, masking V drops the head's output into its own lanes, so the summed PV
    # results ARE the concatenated multi-head output -> one standard out-projection.
    attn_acc = None
    for hd in range(N_HEADS):
        hm = vrow(_V_HMASK + hd).astype(cdt)        # head-h lane mask (1, 128)
        qh = (q2 * hm).reshape(bt, L, DP)
        vh = (v2 * hm).reshape(bt, L, DP)
        s = jnp.einsum("bqd,bkd->bqk", qh, k3, preferred_element_type=jnp.float32)
        s = s - jnp.max(s, axis=-1, keepdims=True)
        p = jnp.exp(s)
        denom = jnp.sum(p, axis=-1, keepdims=True)
        if cdt == jnp.float32:
            p = p / denom                           # exact softmax on the verify path
        else:
            p = p * pl.reciprocal(denom, approx=True)   # EUP slot on the bf16 fast path
        o = jnp.einsum("bqk,bkd->bqd", p.astype(cdt), vh,
                       preferred_element_type=jnp.float32)
        attn_acc = o if attn_acc is None else attn_acc + o

    attn = jnp.dot(attn_acc.reshape(M, DP).astype(cdt), out_w_ref[...],
                   preferred_element_type=jnp.float32) + attn_b
    # residual + post-norm (dropout = identity at inference)
    h = _layer_norm(h + attn, ln1_g, ln1_b, ln_mask)

    # ---- feed-forward 80 -> 256 -> 80 (128-lane padded) ----
    ff = jnp.dot(h.astype(cdt), ff1_w_ref[...],
                 preferred_element_type=jnp.float32) + ff1_b
    ff = jnp.maximum(ff, 0.0)
    ff = jnp.dot(ff.astype(cdt), ff2_w_ref[...],
                 preferred_element_type=jnp.float32) + ff2_b
    h = _layer_norm(h + ff, ln2_g, ln2_b, ln_mask)

    # ---- mean pool over the sequence -> lane-dense (bt, 128) stats slab ----
    out_ref[0] = jnp.sum(h.reshape(bt, L, DP), axis=1) * (1.0 / L)


def make_params(key):
    """Deterministic synthetic parameters. All matrices stored as (in, out)."""
    def nrm(k, shape, scale=0.1):
        return (scale * jax.random.normal(k, shape)).astype(jnp.float32)

    ks = jax.random.split(key, 12)
    params = dict(
        parent_w=nrm(ks[0], (IN_DIM, D_MODEL)),
        parent_b=nrm(ks[1], (1, D_MODEL)),
        qkv_w=nrm(ks[2], (D_MODEL, 3 * D_MODEL)),
        qkv_b=nrm(ks[3], (1, 3 * D_MODEL)),
        outp_w=nrm(ks[4], (D_MODEL, D_MODEL)),
        outp_b=nrm(ks[5], (1, D_MODEL)),
        ln1_g=jnp.ones((1, D_MODEL), jnp.float32),
        ln1_b=jnp.zeros((1, D_MODEL), jnp.float32),
        ff1_w=nrm(ks[6], (D_MODEL, D_FF)),
        ff1_b=nrm(ks[7], (1, D_FF)),
        ff2_w=nrm(ks[8], (D_FF, D_MODEL)),
        ff2_b=nrm(ks[9], (1, D_MODEL)),
        ln2_g=jnp.ones((1, D_MODEL), jnp.float32),
        ln2_b=jnp.zeros((1, D_MODEL), jnp.float32),
        pred1_w=nrm(ks[10], (D_MODEL, D_MODEL)),
        pred1_b=jnp.zeros((1, D_MODEL), jnp.float32),
        pred2_w=nrm(ks[11], (D_MODEL, N_SPKS)),
        pred2_b=jnp.zeros((1, N_SPKS), jnp.float32),
    )
    return params


def _pack_params(params, compute_dtype):
    """Pad / repack the raw (in,out) parameters into the lane-aligned kernel layout."""
    def pad2(w, rows, cols):
        r, c = w.shape
        return jnp.pad(w, ((0, rows - r), (0, cols - c)))

    def padrow(v, width=DP):
        v = jnp.asarray(v).reshape(-1).astype(jnp.float32)
        return jnp.pad(v, (0, width - v.shape[0]))

    scale = 1.0 / (HEAD_DIM ** 0.5)

    parent_w = pad2(params["parent_w"], DP_IN, DP).astype(compute_dtype)

    qkv_w_raw = params["qkv_w"]                    # (80, 240) = [q | k | v]
    qkv_b_raw = params["qkv_b"].reshape(-1)        # (240,)
    outp_w = params["outp_w"]                      # (80, 80)
    outp_b = params["outp_b"].reshape(-1)          # (80,)

    q_w = qkv_w_raw[:, 0:D_MODEL] * scale          # 1/sqrt(head_dim) folded into W_q
    k_w = qkv_w_raw[:, D_MODEL:2 * D_MODEL]
    v_w = qkv_w_raw[:, 2 * D_MODEL:3 * D_MODEL]
    q_b = qkv_b_raw[0:D_MODEL] * scale
    v_b = qkv_b_raw[2 * D_MODEL:3 * D_MODEL]

    # Fused (128, 384) [Q|K|V] weight, each block padded to 128 cols; lanes [h*40,(h+1)*40)
    # of each block hold head h.  K bias is softmax-invariant (constant per query row) ->
    # dropped exactly.  V bias: softmax rows sum to 1, so it shifts each head output by
    # v_b[head]; fold its out-projection exactly into the attention output bias.
    qkv_w = jnp.concatenate(
        [pad2(q_w, DP, DP), pad2(k_w, DP, DP), pad2(v_w, DP, DP)],
        axis=1).astype(compute_dtype)
    qkv_b = jnp.concatenate(
        [padrow(q_b), jnp.zeros((DP,), jnp.float32), jnp.zeros((DP,), jnp.float32)])

    out_w = pad2(outp_w, DP, DP).astype(compute_dtype)
    attn_b = outp_b + v_b @ outp_w                 # exact V-bias fold

    ff1_w = pad2(params["ff1_w"], DP, D_FF).astype(compute_dtype)
    ff2_w = pad2(params["ff2_w"], D_FF, DP).astype(compute_dtype)

    lanes = jnp.arange(DP)
    vec = jnp.zeros((VEC_ROWS, 3 * DP), jnp.float32)
    vec = vec.at[_V_PARENT_B, 0:DP].set(padrow(params["parent_b"]))
    vec = vec.at[_V_ATTN_B, 0:DP].set(padrow(attn_b))
    vec = vec.at[_V_LN1_G, 0:DP].set(padrow(params["ln1_g"]))
    vec = vec.at[_V_LN1_B, 0:DP].set(padrow(params["ln1_b"]))
    vec = vec.at[_V_FF2_B, 0:DP].set(padrow(params["ff2_b"]))
    vec = vec.at[_V_LN2_G, 0:DP].set(padrow(params["ln2_g"]))
    vec = vec.at[_V_LN2_B, 0:DP].set(padrow(params["ln2_b"]))
    vec = vec.at[_V_MASK, 0:DP].set((lanes < D_MODEL).astype(jnp.float32))
    for hd in range(N_HEADS):
        hm = ((lanes >= hd * HEAD_DIM) & (lanes < (hd + 1) * HEAD_DIM)).astype(jnp.float32)
        vec = vec.at[_V_HMASK + hd, 0:DP].set(hm)
    vec = vec.at[_V_FF1_B, 0:D_FF].set(padrow(params["ff1_b"], D_FF))
    vec = vec.at[_V_QKV_B, 0:3 * DP].set(qkv_b)

    # Prediction head stays in XLA (full-batch GEMMs, f32); pad pred1_w rows to 128 lanes.
    pred1_w = jnp.pad(params["pred1_w"], ((0, DP - D_MODEL), (0, 0)))
    head = (pred1_w, params["pred1_b"], params["pred2_w"], params["pred2_b"])
    return (parent_w, qkv_w, out_w, ff1_w, ff2_w, vec), head


def classifier_forward(x, params, *, batch_block=None, compute_dtype=jnp.bfloat16):
    B, L, _ = x.shape
    if batch_block is None:
        # Target M = bt*L ~ 1024 rows per grid step (MXU-friendly, per-step overhead
        # amortized); >= 2 blocks when B > 1 and an even block count so both v7x
        # TensorCores get balanced work.  Per-step f32 activations ~5 KiB/row of M, so
        # M ~ 1024 stays far below even v7x's 32 MiB scoped-VMEM default.
        target_m = 1024
        bt0 = max(1, min(target_m // L, pl.cdiv(B, 2)))
        nb = pl.cdiv(B, bt0)
        if nb > 1 and nb % 2:
            nb += 1
        batch_block = max(1, pl.cdiv(B, nb))
    bt = max(1, min(batch_block, B))
    n_blocks = pl.cdiv(B, bt)
    b_pad = n_blocks * bt

    # Pad batch to a whole number of blocks and features to 128 lanes.  Padded rows run
    # through a uniform softmax / constant-row LayerNorm (finite, no NaN) and are sliced off.
    xp = jnp.pad(x, ((0, b_pad - B), (0, 0), (0, DP_IN - IN_DIM))).astype(compute_dtype)

    (parent_w, qkv_w, out_w, ff1_w, ff2_w, vec), \
        (pred1_w, pred1_b, pred2_w, pred2_b) = _pack_params(params, compute_dtype)

    def const2(shape):
        return pl.BlockSpec(shape, lambda b: (0, 0))

    stats = pl.pallas_call(
        encoder_kernel,
        out_shape=jax.ShapeDtypeStruct((n_blocks, bt, DP), jnp.float32),
        grid=(n_blocks,),
        in_specs=[
            pl.BlockSpec((bt, L, DP_IN), lambda b: (b, 0, 0)),   # x block
            const2((DP_IN, DP)),                                 # parent_w
            const2((DP, 3 * DP)),                                # fused QKV weight
            const2((DP, DP)),                                    # attention out-proj
            const2((DP, D_FF)),                                  # ff1_w
            const2((D_FF, DP)),                                  # ff2_w
            const2((VEC_ROWS, 3 * DP)),                          # packed vectors (+biases)
        ],
        out_specs=pl.BlockSpec((1, bt, DP), lambda b: (b, 0, 0)),
        compiler_params=pltpu.CompilerParams(
            dimension_semantics=("parallel",)),
    )(xp, parent_w, qkv_w, out_w, ff1_w, ff2_w, vec)

    stats = stats.reshape(b_pad, DP)[:B]            # (B, 128); lanes >= 80 are exactly 0
    # ---- prediction head: one full-batch GEMM pair in XLA (f32) ----
    p1 = jnp.maximum(stats @ pred1_w + pred1_b, 0.0)
    return p1 @ pred2_w + pred2_b                   # (B, 600)


def classifier_reference(x, params):
    """Pure-JAX f32 reference mirroring the PyTorch forward (eval mode)."""
    def ln(h, g, b):
        mu = jnp.mean(h, axis=-1, keepdims=True)
        var = jnp.mean((h - mu) ** 2, axis=-1, keepdims=True)
        return (h - mu) / jnp.sqrt(var + LN_EPS) * g + b

    h = x @ params["parent_w"] + params["parent_b"]                       # (B, L, 80)
    qkv = h @ params["qkv_w"] + params["qkv_b"]
    q, k, v = jnp.split(qkv, 3, axis=-1)
    B, L, _ = h.shape
    qh = q.reshape(B, L, N_HEADS, HEAD_DIM).transpose(0, 2, 1, 3)
    kh = k.reshape(B, L, N_HEADS, HEAD_DIM).transpose(0, 2, 1, 3)
    vh = v.reshape(B, L, N_HEADS, HEAD_DIM).transpose(0, 2, 1, 3)
    s = jnp.einsum("bhqd,bhkd->bhqk", qh, kh) / (HEAD_DIM ** 0.5)
    p = jax.nn.softmax(s, axis=-1)
    o = jnp.einsum("bhqk,bhkd->bhqd", p, vh).transpose(0, 2, 1, 3).reshape(B, L, D_MODEL)
    o = o @ params["outp_w"] + params["outp_b"]
    h = ln(h + o, params["ln1_g"], params["ln1_b"])
    ff = jax.nn.relu(h @ params["ff1_w"] + params["ff1_b"]) @ params["ff2_w"] + params["ff2_b"]
    h = ln(h + ff, params["ln2_g"], params["ln2_b"])
    stats = jnp.mean(h, axis=1)                                           # (B, 80)
    p1 = jax.nn.relu(stats @ params["pred1_w"] + params["pred1_b"])
    return p1 @ params["pred2_w"] + params["pred2_b"]                     # (B, 600)


if __name__ == "__main__":
    key = jax.random.PRNGKey(0)
    k_x, k_p = jax.random.split(key)

    B, L = 2, 8
    x = jax.random.normal(k_x, (B, L, IN_DIM), dtype=jnp.float32)
    params = make_params(k_p)

    ref = classifier_reference(x, params)

    # 1) f32 operands + exact softmax: verifies the fused-kernel math (lane padding,
    #    head-lane masking, fused QKV, bias folding, masked LayerNorm) against the ref.
    out_f32 = jax.block_until_ready(
        classifier_forward(x, params, compute_dtype=jnp.float32))
    assert out_f32.shape == (B, N_SPKS), out_f32.shape
    assert jnp.allclose(out_f32, ref, rtol=1e-2, atol=1e-2), \
        float(jnp.max(jnp.abs(out_f32 - ref)))

    # 2) default bf16 matmul operands (f32 accumulation, f32 LN; approx-reciprocal softmax):
    #    MXU fast path; looser tolerance only accounts for bf16 operand quantization.
    out = jax.block_until_ready(classifier_forward(x, params))
    assert out.shape == (B, N_SPKS), out.shape
    assert jnp.allclose(out, ref, rtol=3e-2, atol=3e-2), \
        float(jnp.max(jnp.abs(out - ref)))

    # 3) batch not divisible by the block size -> exercises batch padding + bt > 1 blocks.
    B2 = 5
    x2 = jax.random.normal(jax.random.PRNGKey(1), (B2, L, IN_DIM), dtype=jnp.float32)
    ref2 = classifier_reference(x2, params)
    out2 = jax.block_until_ready(classifier_forward(x2, params))
    assert out2.shape == (B2, N_SPKS), out2.shape
    assert jnp.allclose(out2, ref2, rtol=3e-2, atol=3e-2), \
        float(jnp.max(jnp.abs(out2 - ref2)))

    print("KERNEL_OK")
</pallas_src>

<mosaic_0001>
module attributes {stable_mosaic.version = 11 : i64} {
  func.func @encoder_kernel(%arg0: i32, %arg1: memref<1x8x128xf32, #tpu.memory_space<vmem>>, %arg2: memref<128x128xf32, #tpu.memory_space<vmem>>, %arg3: memref<128x384xf32, #tpu.memory_space<vmem>>, %arg4: memref<128x128xf32, #tpu.memory_space<vmem>>, %arg5: memref<128x256xf32, #tpu.memory_space<vmem>>, %arg6: memref<256x128xf32, #tpu.memory_space<vmem>>, %arg7: memref<16x384xf32, #tpu.memory_space<vmem>>, %arg8: memref<1x1x128xf32, #tpu.memory_space<vmem>>) attributes {dimension_semantics = [#tpu.dimension_semantics<parallel>], iteration_bounds = array<i64: 2>, scalar_prefetch = 0 : i64, scratch_operands = 0 : i64, tpu.core_type = #tpu.core_type<tc>, window_params = [{transform_indices = @transform_0, window_bounds = array<i64: 1, 8, 128>}, {pipeline_mode = #tpu.pipeline_mode<synchronous>, transform_indices = @transform_1, window_bounds = array<i64: 128, 128>}, {pipeline_mode = #tpu.pipeline_mode<synchronous>, transform_indices = @transform_2, window_bounds = array<i64: 128, 384>}, {pipeline_mode = #tpu.pipeline_mode<synchronous>, transform_indices = @transform_3, window_bounds = array<i64: 128, 128>}, {pipeline_mode = #tpu.pipeline_mode<synchronous>, transform_indices = @transform_4, window_bounds = array<i64: 128, 256>}, {pipeline_mode = #tpu.pipeline_mode<synchronous>, transform_indices = @transform_5, window_bounds = array<i64: 256, 128>}, {pipeline_mode = #tpu.pipeline_mode<synchronous>, transform_indices = @transform_6, window_bounds = array<i64: 16, 384>}, {transform_indices = @transform_7, window_bounds = array<i64: 1, 1, 128>}]} {
    %c0 = arith.constant 0 : index
    %c0_0 = arith.constant 0 : index
    %0 = vector.load %arg7[%c0, %c0_0] : memref<16x384xf32, #tpu.memory_space<vmem>>, vector<1x128xf32>
    %c1 = arith.constant 1 : index
    %c0_1 = arith.constant 0 : index
    %1 = vector.load %arg7[%c1, %c0_1] : memref<16x384xf32, #tpu.memory_space<vmem>>, vector<1x128xf32>
    %c2 = arith.constant 2 : index
    %c0_2 = arith.constant 0 : index
    %2 = vector.load %arg7[%c2, %c0_2] : memref<16x384xf32, #tpu.memory_space<vmem>>, vector<1x128xf32>
    %c3 = arith.constant 3 : index
    %c0_3 = arith.constant 0 : index
    %3 = vector.load %arg7[%c3, %c0_3] : memref<16x384xf32, #tpu.memory_space<vmem>>, vector<1x128xf32>
    %c4 = arith.constant 4 : index
    %c0_4 = arith.constant 0 : index
    %4 = vector.load %arg7[%c4, %c0_4] : memref<16x384xf32, #tpu.memory_space<vmem>>, vector<1x128xf32>
    %c5 = arith.constant 5 : index
    %c0_5 = arith.constant 0 : index
    %5 = vector.load %arg7[%c5, %c0_5] : memref<16x384xf32, #tpu.memory_space<vmem>>, vector<1x128xf32>
    %c6 = arith.constant 6 : index
    %c0_6 = arith.constant 0 : index
    %6 = vector.load %arg7[%c6, %c0_6] : memref<16x384xf32, #tpu.memory_space<vmem>>, vector<1x128xf32>
    %c7 = arith.constant 7 : index
    %c0_7 = arith.constant 0 : index
    %7 = vector.load %arg7[%c7, %c0_7] : memref<16x384xf32, #tpu.memory_space<vmem>>, vector<1x128xf32>
    %c10 = arith.constant 10 : index
    %c0_8 = arith.constant 0 : index
    %8 = vector.load %arg7[%c10, %c0_8] : memref<16x384xf32, #tpu.memory_space<vmem>>, vector<1x256xf32>
    %c11 = arith.constant 11 : index
    %c0_9 = arith.constant 0 : index
    %9 = vector.load %arg7[%c11, %c0_9] : memref<16x384xf32, #tpu.memory_space<vmem>>, vector<1x384xf32>
    %c0_10 = arith.constant 0 : index
    %c0_11 = arith.constant 0 : index
    %c0_12 = arith.constant 0 : index
    %10 = vector.load %arg1[%c0_10, %c0_11, %c0_12] : memref<1x8x128xf32, #tpu.memory_space<vmem>>, vector<1x8x128xf32>
    %11 = vector.shape_cast %10 : vector<1x8x128xf32> to vector<8x128xf32>
    %c0_13 = arith.constant 0 : index
    %c0_14 = arith.constant 0 : index
    %12 = vector.load %arg2[%c0_13, %c0_14] : memref<128x128xf32, #tpu.memory_space<vmem>>, vector<128x128xf32>
    %cst = arith.constant dense<0.000000e+00> : vector<8x128xf32>
    %13 = tpu.matmul %11, %12, %cst {dimension_numbers = #tpu.dot_dimension_numbers<[1], [0], [0], [1], [0, 0, 1, 1], [], []>} : vector<8x128xf32>, vector<128x128xf32>, vector<8x128xf32> -> vector<8x128xf32>
    %14 = vector.broadcast %0 : vector<1x128xf32> to vector<8x128xf32>
    %15 = arith.addf %13, %14 : vector<8x128xf32>
    %c0_15 = arith.constant 0 : index
    %c0_16 = arith.constant 0 : index
    %16 = vector.load %arg3[%c0_15, %c0_16] : memref<128x384xf32, #tpu.memory_space<vmem>>, vector<128x384xf32>
    %cst_17 = arith.constant dense<0.000000e+00> : vector<8x384xf32>
    %17 = tpu.matmul %15, %16, %cst_17 {dimension_numbers = #tpu.dot_dimension_numbers<[1], [0], [0], [1], [0, 0, 1, 1], [], []>} : vector<8x128xf32>, vector<128x384xf32>, vector<8x384xf32> -> vector<8x384xf32>
    %18 = vector.broadcast %9 : vector<1x384xf32> to vector<8x384xf32>
    %19 = arith.addf %17, %18 : vector<8x384xf32>
    %20 = vector.extract_strided_slice %19 {offsets = [0, 0], sizes = [8, 128], strides = [1, 1]} : vector<8x384xf32> to vector<8x128xf32>
    %21 = vector.extract_strided_slice %19 {offsets = [0, 128], sizes = [8, 128], strides = [1, 1]} : vector<8x384xf32> to vector<8x128xf32>
    %22 = vector.shape_cast %21 : vector<8x128xf32> to vector<1x8x128xf32>
    %23 = vector.extract_strided_slice %19 {offsets = [0, 256], sizes = [8, 128], strides = [1, 1]} : vector<8x384xf32> to vector<8x128xf32>
    %c8 = arith.constant 8 : index
    %c0_18 = arith.constant 0 : index
    %24 = vector.load %arg7[%c8, %c0_18] : memref<16x384xf32, #tpu.memory_space<vmem>>, vector<1x128xf32>
    %25 = vector.broadcast %24 : vector<1x128xf32> to vector<8x128xf32>
    %26 = arith.mulf %20, %25 : vector<8x128xf32>
    %27 = vector.shape_cast %26 : vector<8x128xf32> to vector<1x8x128xf32>
    %28 = vector.broadcast %24 : vector<1x128xf32> to vector<8x128xf32>
    %29 = arith.mulf %23, %28 : vector<8x128xf32>
    %30 = vector.shape_cast %29 : vector<8x128xf32> to vector<1x8x128xf32>
    "tpu.trace_start"() <{level = 10 : i32, message = "bqd,bkd->bqk"}> : () -> ()
    %cst_19 = arith.constant dense<0.000000e+00> : vector<1x8x8xf32>
    %31 = tpu.matmul %27, %22, %cst_19 {dimension_numbers = #tpu.dot_dimension_numbers<[2], [2], [1], [1], [0, 0, 0, 1, 1, 1], [0], [0]>} : vector<1x8x128xf32>, vector<1x8x128xf32>, vector<1x8x8xf32> -> vector<1x8x8xf32>
    "tpu.trace_stop"() : () -> ()
    %cst_20 = arith.constant dense<0xFF800000> : vector<1x8xf32>
    %32 = vector.multi_reduction <maximumf>, %31, %cst_20 [2] : vector<1x8x8xf32> to vector<1x8xf32>
    %33 = vector.shape_cast %32 : vector<1x8xf32> to vector<1x8x1xf32>
    %34 = vector.broadcast %33 : vector<1x8x1xf32> to vector<1x8x8xf32>
    %35 = arith.subf %31, %34 : vector<1x8x8xf32>
    %36 = math.exp %35 : vector<1x8x8xf32>
    %cst_21 = arith.constant dense<0.000000e+00> : vector<1x8xf32>
    %37 = vector.multi_reduction <add>, %36, %cst_21 [2] : vector<1x8x8xf32> to vector<1x8xf32>
    %38 = vector.shape_cast %37 : vector<1x8xf32> to vector<1x8x1xf32>
    %39 = vector.broadcast %38 : vector<1x8x1xf32> to vector<1x8x8xf32>
    %40 = arith.divf %36, %39 : vector<1x8x8xf32>
    "tpu.trace_start"() <{level = 10 : i32, message = "bqk,bkd->bqd"}> : () -> ()
    %cst_22 = arith.constant dense<0.000000e+00> : vector<1x8x128xf32>
    %41 = tpu.matmul %40, %30, %cst_22 {dimension_numbers = #tpu.dot_dimension_numbers<[2], [1], [1], [2], [0, 0, 0, 1, 1, 2], [0], [0]>} : vector<1x8x8xf32>, vector<1x8x128xf32>, vector<1x8x128xf32> -> vector<1x8x128xf32>
    "tpu.trace_stop"() : () -> ()
    %c9 = arith.constant 9 : index
    %c0_23 = arith.constant 0 : index
    %42 = vector.load %arg7[%c9, %c0_23] : memref<16x384xf32, #tpu.memory_space<vmem>>, vector<1x128xf32>
    %43 = vector.broadcast %42 : vector<1x128xf32> to vector<8x128xf32>
    %44 = arith.mulf %20, %43 : vector<8x128xf32>
    %45 = vector.shape_cast %44 : vector<8x128xf32> to vector<1x8x128xf32>
    %46 = vector.broadcast %42 : vector<1x128xf32> to vector<8x128xf32>
    %47 = arith.mulf %23, %46 : vector<8x128xf32>
    %48 = vector.shape_cast %47 : vector<8x128xf32> to vector<1x8x128xf32>
    "tpu.trace_start"() <{level = 10 : i32, message = "bqd,bkd->bqk"}> : () -> ()
    %cst_24 = arith.constant dense<0.000000e+00> : vector<1x8x8xf32>
    %49 = tpu.matmul %45, %22, %cst_24 {dimension_numbers = #tpu.dot_dimension_numbers<[2], [2], [1], [1], [0, 0, 0, 1, 1, 1], [0], [0]>} : vector<1x8x128xf32>, vector<1x8x128xf32>, vector<1x8x8xf32> -> vector<1x8x8xf32>
    "tpu.trace_stop"() : () -> ()
    %cst_25 = arith.constant dense<0xFF800000> : vector<1x8xf32>
    %50 = vector.multi_reduction <maximumf>, %49, %cst_25 [2] : vector<1x8x8xf32> to vector<1x8xf32>
    %51 = vector.shape_cast %50 : vector<1x8xf32> to vector<1x8x1xf32>
    %52 = vector.broadcast %51 : vector<1x8x1xf32> to vector<1x8x8xf32>
    %53 = arith.subf %49, %52 : vector<1x8x8xf32>
    %54 = math.exp %53 : vector<1x8x8xf32>
    %cst_26 = arith.constant dense<0.000000e+00> : vector<1x8xf32>
    %55 = vector.multi_reduction <add>, %54, %cst_26 [2] : vector<1x8x8xf32> to vector<1x8xf32>
    %56 = vector.shape_cast %55 : vector<1x8xf32> to vector<1x8x1xf32>
    %57 = vector.broadcast %56 : vector<1x8x1xf32> to vector<1x8x8xf32>
    %58 = arith.divf %54, %57 : vector<1x8x8xf32>
    "tpu.trace_start"() <{level = 10 : i32, message = "bqk,bkd->bqd"}> : () -> ()
    %cst_27 = arith.constant dense<0.000000e+00> : vector<1x8x128xf32>
    %59 = tpu.matmul %58, %48, %cst_27 {dimension_numbers = #tpu.dot_dimension_numbers<[2], [1], [1], [2], [0, 0, 0, 1, 1, 2], [0], [0]>} : vector<1x8x8xf32>, vector<1x8x128xf32>, vector<1x8x128xf32> -> vector<1x8x128xf32>
    "tpu.trace_stop"() : () -> ()
    %60 = arith.addf %41, %59 : vector<1x8x128xf32>
    %61 = vector.shape_cast %60 : vector<1x8x128xf32> to vector<8x128xf32>
    %c0_28 = arith.constant 0 : index
    %c0_29 = arith.constant 0 : index
    %62 = vector.load %arg4[%c0_28, %c0_29] : memref<128x128xf32, #tpu.memory_space<vmem>>, vector<128x128xf32>
    %cst_30 = arith.constant dense<0.000000e+00> : vector<8x128xf32>
    %63 = tpu.matmul %61, %62, %cst_30 {dimension_numbers = #tpu.dot_dimension_numbers<[1], [0], [0], [1], [0, 0, 1, 1], [], []>} : vector<8x128xf32>, vector<128x128xf32>, vector<8x128xf32> -> vector<8x128xf32>
    %64 = vector.broadcast %1 : vector<1x128xf32> to vector<8x128xf32>
    %65 = arith.addf %63, %64 : vector<8x128xf32>
    %66 = arith.addf %15, %65 : vector<8x128xf32>
    %cst_31 = arith.constant dense<0.000000e+00> : vector<8xf32>
    %67 = vector.multi_reduction <add>, %66, %cst_31 [1] : vector<8x128xf32> to vector<8xf32>
    %68 = vector.shape_cast %67 : vector<8xf32> to vector<8x1xf32>
    %cst_32 = arith.constant 1.250000e-02 : f32
    %69 = vector.broadcast %cst_32 : f32 to vector<8x1xf32>
    %70 = arith.mulf %68, %69 : vector<8x1xf32>
    %71 = vector.broadcast %70 : vector<8x1xf32> to vector<8x128xf32>
    %72 = arith.subf %66, %71 : vector<8x128xf32>
    %73 = vector.broadcast %7 : vector<1x128xf32> to vector<8x128xf32>
    %74 = arith.mulf %72, %73 : vector<8x128xf32>
    %75 = arith.mulf %74, %74 : vector<8x128xf32>
    %cst_33 = arith.constant dense<0.000000e+00> : vector<8xf32>
    %76 = vector.multi_reduction <add>, %75, %cst_33 [1] : vector<8x128xf32> to vector<8xf32>
    %77 = vector.shape_cast %76 : vector<8xf32> to vector<8x1xf32>
    %cst_34 = arith.constant 1.250000e-02 : f32
    %78 = vector.broadcast %cst_34 : f32 to vector<8x1xf32>
    %79 = arith.mulf %77, %78 : vector<8x1xf32>
    %cst_35 = arith.constant 9.99999974E-6 : f32
    %80 = vector.broadcast %cst_35 : f32 to vector<8x1xf32>
    %81 = arith.addf %79, %80 : vector<8x1xf32>
    %82 = math.rsqrt %81 : vector<8x1xf32>
    %83 = vector.broadcast %82 : vector<8x1xf32> to vector<8x128xf32>
    %84 = arith.mulf %74, %83 : vector<8x128xf32>
    %85 = vector.broadcast %2 : vector<1x128xf32> to vector<8x128xf32>
    %86 = arith.mulf %84, %85 : vector<8x128xf32>
    %87 = vector.broadcast %3 : vector<1x128xf32> to vector<8x128xf32>
    %88 = arith.addf %86, %87 : vector<8x128xf32>
    %c0_36 = arith.constant 0 : index
    %c0_37 = arith.constant 0 : index
    %89 = vector.load %arg5[%c0_36, %c0_37] : memref<128x256xf32, #tpu.memory_space<vmem>>, vector<128x256xf32>
    %cst_38 = arith.constant dense<0.000000e+00> : vector<8x256xf32>
    %90 = tpu.matmul %88, %89, %cst_38 {dimension_numbers = #tpu.dot_dimension_numbers<[1], [0], [0], [1], [0, 0, 1, 1], [], []>} : vector<8x128xf32>, vector<128x256xf32>, vector<8x256xf32> -> vector<8x256xf32>
    %91 = vector.broadcast %8 : vector<1x256xf32> to vector<8x256xf32>
    %92 = arith.addf %90, %91 : vector<8x256xf32>
    %cst_39 = arith.constant 0.000000e+00 : f32
    %93 = vector.broadcast %cst_39 : f32 to vector<8x256xf32>
    %94 = arith.maximumf %92, %93 : vector<8x256xf32>
    %c0_40 = arith.constant 0 : index
    %c0_41 = arith.constant 0 : index
    %95 = vector.load %arg6[%c0_40, %c0_41] : memref<256x128xf32, #tpu.memory_space<vmem>>, vector<256x128xf32>
    %cst_42 = arith.constant dense<0.000000e+00> : vector<8x128xf32>
    %96 = tpu.matmul %94, %95, %cst_42 {dimension_numbers = #tpu.dot_dimension_numbers<[1], [0], [0], [1], [0, 0, 1, 1], [], []>} : vector<8x256xf32>, vector<256x128xf32>, vector<8x128xf32> -> vector<8x128xf32>
    %97 = vector.broadcast %4 : vector<1x128xf32> to vector<8x128xf32>
    %98 = arith.addf %96, %97 : vector<8x128xf32>
    %99 = arith.addf %88, %98 : vector<8x128xf32>
    %cst_43 = arith.constant dense<0.000000e+00> : vector<8xf32>
    %100 = vector.multi_reduction <add>, %99, %cst_43 [1] : vector<8x128xf32> to vector<8xf32>
    %101 = vector.shape_cast %100 : vector<8xf32> to vector<8x1xf32>
    %cst_44 = arith.constant 1.250000e-02 : f32
    %102 = vector.broadcast %cst_44 : f32 to vector<8x1xf32>
    %103 = arith.mulf %101, %102 : vector<8x1xf32>
    %104 = vector.broadcast %103 : vector<8x1xf32> to vector<8x128xf32>
    %105 = arith.subf %99, %104 : vector<8x128xf32>
    %106 = vector.broadcast %7 : vector<1x128xf32> to vector<8x128xf32>
    %107 = arith.mulf %105, %106 : vector<8x128xf32>
    %108 = arith.mulf %107, %107 : vector<8x128xf32>
    %cst_45 = arith.constant dense<0.000000e+00> : vector<8xf32>
    %109 = vector.multi_reduction <add>, %108, %cst_45 [1] : vector<8x128xf32> to vector<8xf32>
    %110 = vector.shape_cast %109 : vector<8xf32> to vector<8x1xf32>
    %cst_46 = arith.constant 1.250000e-02 : f32
    %111 = vector.broadcast %cst_46 : f32 to vector<8x1xf32>
    %112 = arith.mulf %110, %111 : vector<8x1xf32>
    %cst_47 = arith.constant 9.99999974E-6 : f32
    %113 = vector.broadcast %cst_47 : f32 to vector<8x1xf32>
    %114 = arith.addf %112, %113 : vector<8x1xf32>
    %115 = math.rsqrt %114 : vector<8x1xf32>
    %116 = vector.broadcast %115 : vector<8x1xf32> to vector<8x128xf32>
    %117 = arith.mulf %107, %116 : vector<8x128xf32>
    %118 = vector.broadcast %5 : vector<1x128xf32> to vector<8x128xf32>
    %119 = arith.mulf %117, %118 : vector<8x128xf32>
    %120 = vector.broadcast %6 : vector<1x128xf32> to vector<8x128xf32>
    %121 = arith.addf %119, %120 : vector<8x128xf32>
    %122 = vector.shape_cast %121 : vector<8x128xf32> to vector<1x8x128xf32>
    %cst_48 = arith.constant dense<0.000000e+00> : vector<1x128xf32>
    %123 = vector.multi_reduction <add>, %122, %cst_48 [1] : vector<1x8x128xf32> to vector<1x128xf32>
    %cst_49 = arith.constant 1.250000e-01 : f32
    %124 = vector.broadcast %cst_49 : f32 to vector<1x128xf32>
    %125 = arith.mulf %123, %124 : vector<1x128xf32>
    %c0_50 = arith.constant 0 : index
    %c0_51 = arith.constant 0 : index
    %c0_52 = arith.constant 0 : index
    %126 = vector.load %arg8[%c0_50, %c0_51, %c0_52] : memref<1x1x128xf32, #tpu.memory_space<vmem>>, vector<1x1x128xf32>
    %127 = vector.shape_cast %126 : vector<1x1x128xf32> to vector<1x128xf32>
    %128 = vector.shape_cast %125 : vector<1x128xf32> to vector<1x1x128xf32>
    tpu.vector_store %arg8[%c0_50, %c0_51, %c0_52], %128 {strides = array<i32>} : memref<1x1x128xf32, #tpu.memory_space<vmem>>, vector<1x1x128xf32>,
    return
  }
  func.func @transform_0(%arg0: i32) -> (i32, i32, i32) {
    %c0_i32 = arith.constant 0 : i32
    %c0_i32_0 = arith.constant 0 : i32
    %c0_i32_1 = arith.constant 0 : i32
    return %arg0, %c0_i32, %c0_i32_0 : i32, i32, i32
  }
  func.func @transform_1(%arg0: i32) -> (i32, i32) {
    %c0_i32 = arith.constant 0 : i32
    %c0_i32_0 = arith.constant 0 : i32
    %c0_i32_1 = arith.constant 0 : i32
    return %c0_i32, %c0_i32_0 : i32, i32
  }
  func.func @transform_2(%arg0: i32) -> (i32, i32) {
    %c0_i32 = arith.constant 0 : i32
    %c0_i32_0 = arith.constant 0 : i32
    %c0_i32_1 = arith.constant 0 : i32
    return %c0_i32, %c0_i32_0 : i32, i32
  }
  func.func @transform_3(%arg0: i32) -> (i32, i32) {
    %c0_i32 = arith.constant 0 : i32
    %c0_i32_0 = arith.constant 0 : i32
    %c0_i32_1 = arith.constant 0 : i32
    return %c0_i32, %c0_i32_0 : i32, i32
  }
  func.func @transform_4(%arg0: i32) -> (i32, i32) {
    %c0_i32 = arith.constant 0 : i32
    %c0_i32_0 = arith.constant 0 : i32
    %c0_i32_1 = arith.constant 0 : i32
    return %c0_i32, %c0_i32_0 : i32, i32
  }
  func.func @transform_5(%arg0: i32) -> (i32, i32) {
    %c0_i32 = arith.constant 0 : i32
    %c0_i32_0 = arith.constant 0 : i32
    %c0_i32_1 = arith.constant 0 : i32
    return %c0_i32, %c0_i32_0 : i32, i32
  }
  func.func @transform_6(%arg0: i32) -> (i32, i32) {
    %c0_i32 = arith.constant 0 : i32
    %c0_i32_0 = arith.constant 0 : i32
    %c0_i32_1 = arith.constant 0 : i32
    return %c0_i32, %c0_i32_0 : i32, i32
  }
  func.func @transform_7(%arg0: i32) -> (i32, i32, i32) {
    %c0_i32 = arith.constant 0 : i32
    %c0_i32_0 = arith.constant 0 : i32
    %c0_i32_1 = arith.constant 0 : i32
    return %arg0, %c0_i32, %c0_i32_0 : i32, i32, i32
  }
}

</mosaic_0001>

<llo_original>
// kernel: tpu_custom_call.1
$region0: #{tpu_custom_call.1}
  #allocation0 [shape = 'u32[]', space=smem, size = 0x4, offset = 0x4, fixed_abs, tag = 'smem constant byte address 0x4 - core index']
  #allocation1 [shape = 'u32[144,128]{1,0:T(1,128)}', space=vmem, size = 0x12000, scoped, tag = 'internal scratch']
  %s0 = inlined_call_operand.hbm [shape: f32[2,8,128], index: 0, kind: input, shape index: {}]
  %s1 = inlined_call_operand.hbm [shape: f32[128,128], index: 1, kind: input, shape index: {}]
  %s2 = inlined_call_operand.hbm [shape: f32[128,384], index: 2, kind: input, shape index: {}]
  %s3 = inlined_call_operand.hbm [shape: f32[128,128], index: 3, kind: input, shape index: {}]
  %s4 = inlined_call_operand.hbm [shape: f32[128,256], index: 4, kind: input, shape index: {}]
  %s5 = inlined_call_operand.hbm [shape: f32[256,128], index: 5, kind: input, shape index: {}]
  %s6 = inlined_call_operand.hbm [shape: f32[16,384], index: 6, kind: input, shape index: {}]
  %s7 = inlined_call_operand.hbm [shape: f32[2,1,128], index: 7, kind: output, shape index: {}]
  %s8 = sld [smem:[#allocation0]]
  $region89: #{tpu_custom_call.1} parent=0
    _
  %s10 = ssub.s32 1, %s8
  %s11 = scalar_select 0, %s10, %s8
  $region1: #{tpu_custom_call.1} parent=0
    #allocation2 [shape = 'u8[8192]{0}', space=vmem, size = 0x2000, scoped, tag = 'input window, operand 0']
    #allocation3 [shape = 's32[2]{0}', space=sflag, size = 0x8, scoped, tag = 'scoped memory for tpu_custom_call.1']
    #allocation4 [shape = 's32[2]{0}', space=sflag, size = 0x8, scoped, tag = 'scoped memory for tpu_custom_call.1']
    #allocation5 [shape = 'u8[65536]{0}', space=vmem, size = 0x10000, scoped, tag = 'input window, operand 1, single buffered']
    #allocation6 [shape = 's32[1]{0}', space=sflag, size = 0x4, scoped, tag = 'scoped memory for tpu_custom_call.1']
    #allocation7 [shape = 'u8[196608]{0}', space=vmem, size = 0x30000, scoped, tag = 'input window, operand 2, single buffered']
    #allocation8 [shape = 'u8[65536]{0}', space=vmem, size = 0x10000, scoped, tag = 'input window, operand 3, single buffered']
    #allocation9 [shape = 's32[1]{0}', space=sflag, size = 0x4, scoped, tag = 'scoped memory for tpu_custom_call.1']
    #allocation10 [shape = 'u8[131072]{0}', space=vmem, size = 0x20000, scoped, tag = 'input window, operand 4, single buffered']
    #allocation11 [shape = 'u8[131072]{0}', space=vmem, size = 0x20000, scoped, tag = 'input window, operand 5, single buffered']
    #allocation12 [shape = 's32[1]{0}', space=sflag, size = 0x4, scoped, tag = 'scoped memory for tpu_custom_call.1']
    #allocation13 [shape = 'u8[24576]{0}', space=vmem, size = 0x6000, scoped, tag = 'input window, operand 6, single buffered']
    #allocation14 [shape = 'u8[1024]{0}', space=vmem, size = 0x400, scoped, tag = 'output window, operand 0']
    %12 = vsyncpa [#allocation3], 0
    %s13 = scalar_lea.sflag [#allocation3], 1
    %14 = vsyncpa %s13, 0
    %15 = vsyncpa [#allocation6], 0
    %16 = vsyncpa [#allocation9], 0
    %17 = vsyncpa [#allocation12], 0
    %18 = vsyncpa [#allocation4], 0
    %s19 = scalar_lea.sflag [#allocation4], 1
    %20 = vsyncpa %s19, 0
    loop: start=0, step=1, limit=4
    $region2: #{tpu_custom_call.1} parent=1 // loop_pre_header
      _
    $region3: #{tpu_custom_call.1} parent=1 // loop_header
      %s22 = sphi 0, %s26
      %p23 = scmp.ge.s32.totalorder %s22, 4
      %s32 = sphi 0, %s34
      %s35 = sphi 0, %s32
      %s36 = sphi 0, %s35
      %s52 = sphi 0, %s36
      %s56 = sphi 0, %s56
      %s58 = sphi 0, %s56
      %s59 = sphi 0, %s58
      %s73 = sphi 0, %s59
      %s77 = sphi 0, %s77
      %s79 = sphi 0, %s77
      %s80 = sphi 0, %s79
      %s94 = sphi 0, %s80
      %s98 = sphi 0, %s98
      %s100 = sphi 0, %s98
      %s101 = sphi 0, %s100
      %s115 = sphi 0, %s101
      %s119 = sphi 0, %s119
      %s121 = sphi 0, %s119
      %s122 = sphi 0, %s121
      %s136 = sphi 0, %s122
      %s140 = sphi 0, %s140
      %s142 = sphi 0, %s140
      %s143 = sphi 0, %s142
      %s157 = sphi 0, %s143
      %s161 = sphi 0, %s161
      %s163 = sphi 0, %s161
      %s164 = sphi 0, %s163
      %s178 = sphi 0, %s164
      %s184 = sphi 0, %s186
      %s187 = sphi 0, %s184
      %s188 = sphi 0, %s187
      %s204 = sphi 0, %s188
    $region4: #{tpu_custom_call.1} parent=1 // loop_header_branch
      %25 = sbr.rel (%p23) target = $region8
    $region5: #{tpu_custom_call.1} parent=1 // loop_body
      %s27 = ssub.s32 %s22, 1
      %s28 = ssub.s32 %s22, 2
      %s29 = sadd.s32 %s22, 1
      %s30 = ssub.s32 %s22, %s29
      %p31 = scmp.eq.s32.totalorder %s30, 0
      %s33 = sadd.s32 %s32, 1
      %s34 = scalar_select %p31, %s32, %s33
      %p37 = pneg %p31
      %p38 = scmp.eq.s32.totalorder %s22, 1
      %p39 = por %p37, %p38
      %p40 = scmp.ne.s32.totalorder %s32, %s35
      %p41 = scmp.eq.s32.totalorder %s22, 0
      %p42 = por %p40, %p41
      %p43 = scmp.ne.s32.totalorder %s32, %s35
      %p44 = scmp.eq.s32.totalorder %s27, 1
      %p45 = por %p43, %p44
      %p46 = scmp.ne.s32.totalorder %s35, %s36
      %p47 = scmp.eq.s32.totalorder %s27, 0
      %p48 = por %p46, %p47
      %p49 = scmp.ne.s32.totalorder %s35, %s36
      %p50 = scmp.eq.s32.totalorder %s28, 1
      %p51 = por %p49, %p50
      %p53 = scmp.ne.s32.totalorder %s36, %s52
      %p54 = scmp.eq.s32.totalorder %s28, 0
      %p55 = por %p53, %p54
      %s57 = sadd.s32 %s56, 1
      %p60 = scmp.eq.s32.totalorder %s22, 1
      %p61 = scmp.ne.s32.totalorder %s56, %s58
      %p62 = scmp.eq.s32.totalorder %s22, 0
      %p63 = por %p61, %p62
      %p64 = scmp.ne.s32.totalorder %s56, %s58
      %p65 = scmp.eq.s32.totalorder %s27, 1
      %p66 = por %p64, %p65
      %p67 = scmp.ne.s32.totalorder %s58, %s59
      %p68 = scmp.eq.s32.totalorder %s27, 0
      %p69 = por %p67, %p68
      %p70 = scmp.ne.s32.totalorder %s58, %s59
      %p71 = scmp.eq.s32.totalorder %s28, 1
      %p72 = por %p70, %p71
      %p74 = scmp.ne.s32.totalorder %s59, %s73
      %p75 = scmp.eq.s32.totalorder %s28, 0
      %p76 = por %p74, %p75
      %s78 = sadd.s32 %s77, 1
      %p81 = scmp.eq.s32.totalorder %s22, 1
      %p82 = scmp.ne.s32.totalorder %s77, %s79
      %p83 = scmp.eq.s32.totalorder %s22, 0
      %p84 = por %p82, %p83
      %p85 = scmp.ne.s32.totalorder %s77, %s79
      %p86 = scmp.eq.s32.totalorder %s27, 1
      %p87 = por %p85, %p86
      %p88 = scmp.ne.s32.totalorder %s79, %s80
      %p89 = scmp.eq.s32.totalorder %s27, 0
      %p90 = por %p88, %p89
      %p91 = scmp.ne.s32.totalorder %s79, %s80
      %p92 = scmp.eq.s32.totalorder %s28, 1
      %p93 = por %p91, %p92
      %p95 = scmp.ne.s32.totalorder %s80, %s94
      %p96 = scmp.eq.s32.totalorder %s28, 0
      %p97 = por %p95, %p96
      %s99 = sadd.s32 %s98, 1
      %p102 = scmp.eq.s32.totalorder %s22, 1
      %p103 = scmp.ne.s32.totalorder %s98, %s100
      %p104 = scmp.eq.s32.totalorder %s22, 0
      %p105 = por %p103, %p104
      %p106 = scmp.ne.s32.totalorder %s98, %s100
      %p107 = scmp.eq.s32.totalorder %s27, 1
      %p108 = por %p106, %p107
      %p109 = scmp.ne.s32.totalorder %s100, %s101
      %p110 = scmp.eq.s32.totalorder %s27, 0
      %p111 = por %p109, %p110
      %p112 = scmp.ne.s32.totalorder %s100, %s101
      %p113 = scmp.eq.s32.totalorder %s28, 1
      %p114 = por %p112, %p113
      %p116 = scmp.ne.s32.totalorder %s101, %s115
      %p117 = scmp.eq.s32.totalorder %s28, 0
      %p118 = por %p116, %p117
      %s120 = sadd.s32 %s119, 1
      %p123 = scmp.eq.s32.totalorder %s22, 1
      %p124 = scmp.ne.s32.totalorder %s119, %s121
      %p125 = scmp.eq.s32.totalorder %s22, 0
      %p126 = por %p124, %p125
      %p127 = scmp.ne.s32.totalorder %s119, %s121
      %p128 = scmp.eq.s32.totalorder %s27, 1
      %p129 = por %p127, %p128
      %p130 = scmp.ne.s32.totalorder %s121, %s122
      %p131 = scmp.eq.s32.totalorder %s27, 0
      %p132 = por %p130, %p131
      %p133 = scmp.ne.s32.totalorder %s121, %s122
      %p134 = scmp.eq.s32.totalorder %s28, 1
      %p135 = por %p133, %p134
      %p137 = scmp.ne.s32.totalorder %s122, %s136
      %p138 = scmp.eq.s32.totalorder %s28, 0
      %p139 = por %p137, %p138
      %s141 = sadd.s32 %s140, 1
      %p144 = scmp.eq.s32.totalorder %s22, 1
      %p145 = scmp.ne.s32.totalorder %s140, %s142
      %p146 = scmp.eq.s32.totalorder %s22, 0
      %p147 = por %p145, %p146
      %p148 = scmp.ne.s32.totalorder %s140, %s142
      %p149 = scmp.eq.s32.totalorder %s27, 1
      %p150 = por %p148, %p149
      %p151 = scmp.ne.s32.totalorder %s142, %s143
      %p152 = scmp.eq.s32.totalorder %s27, 0
      %p153 = por %p151, %p152
      %p154 = scmp.ne.s32.totalorder %s142, %s143
      %p155 = scmp.eq.s32.totalorder %s28, 1
      %p156 = por %p154, %p155
      %p158 = scmp.ne.s32.totalorder %s143, %s157
      %p159 = scmp.eq.s32.totalorder %s28, 0
      %p160 = por %p158, %p159
      %s162 = sadd.s32 %s161, 1
      %p165 = scmp.eq.s32.totalorder %s22, 1
      %p166 = scmp.ne.s32.totalorder %s161, %s163
      %p167 = scmp.eq.s32.totalorder %s22, 0
      %p168 = por %p166, %p167
      %p169 = scmp.ne.s32.totalorder %s161, %s163
      %p170 = scmp.eq.s32.totalorder %s27, 1
      %p171 = por %p169, %p170
      %p172 = scmp.ne.s32.totalorder %s163, %s164
      %p173 = scmp.eq.s32.totalorder %s27, 0
      %p174 = por %p172, %p173
      %p175 = scmp.ne.s32.totalorder %s163, %s164
      %p176 = scmp.eq.s32.totalorder %s28, 1
      %p177 = por %p175, %p176
      %p179 = scmp.ne.s32.totalorder %s164, %s178
      %p180 = scmp.eq.s32.totalorder %s28, 0
      %p181 = por %p179, %p180
      %s182 = ssub.s32 %s22, %s29
      %p183 = scmp.eq.s32.totalorder %s182, 0
      %s185 = sadd.s32 %s184, 1
      %s186 = scalar_select %p183, %s184, %s185
      %p189 = pneg %p183
      %p190 = scmp.eq.s32.totalorder %s22, 1
      %p191 = por %p189, %p190
      %p192 = scmp.ne.s32.totalorder %s184, %s187
      %p193 = scmp.eq.s32.totalorder %s22, 0
      %p194 = por %p192, %p193
      %p195 = scmp.ne.s32.totalorder %s184, %s187
      %p196 = scmp.eq.s32.totalorder %s27, 1
      %p197 = por %p195, %p196
      %p198 = scmp.ne.s32.totalorder %s187, %s188
      %p199 = scmp.eq.s32.totalorder %s27, 0
      %p200 = por %p198, %p199
      %p201 = scmp.ne.s32.totalorder %s187, %s188
      %p202 = scmp.eq.s32.totalorder %s28, 1
      %p203 = por %p201, %p202
      %p205 = scmp.ne.s32.totalorder %s188, %s204
      %p206 = scmp.eq.s32.totalorder %s28, 0
      %p207 = por %p205, %p206
      %p208 = scmp.le.s32.totalorder 1, %s22
      %p209 = scmp.lt.s32.totalorder %s22, 3
      %p210 = pnand %p208, %p209
      %p211 = pneg %p210
      // Predicated region
      $region9: #{tpu_custom_call.1} parent=5 // pred_check
        _
      $region10: #{tpu_custom_call.1} parent=5 // pred_check_branch
        %213 = sbr.rel (%p210) target = $region12
      $region11: #{tpu_custom_call.1} parent=5 // pred_region
        %s214 = ssub.s32 %s22, 1
        // Predicated region
        $region13: #{tpu_custom_call.1} parent=11 // pred_check
          %p215 = pneg %p69
        $region14: #{tpu_custom_call.1} parent=11 // pred_check_branch
          %217 = sbr.rel (%p215) target = $region16
        $region15: #{tpu_custom_call.1} parent=11 // pred_region
          %s219 = ssub.s32 2048, 2048
          %220 = vsyncadd [#allocation6], %s219
          %s221 = sshll.u32 [#allocation5], 4
          %s222 = int_to_ptr.vmem [resolvable:$true] %s221
          %227 = dma.hbm_to_vmem [thread:$0]  %s1, 2048, %s222, [#allocation6], 128, 128, 8
        $region16: #{tpu_custom_call.1} parent=11 // pred_fallthru
          _
        // Predicated region
        $region17: #{tpu_custom_call.1} parent=11 // pred_check
          %p228 = pneg %p90
        $region18: #{tpu_custom_call.1} parent=11 // pred_check_branch
          %230 = sbr.rel (%p228) target = $region20
        $region19: #{tpu_custom_call.1} parent=11 // pred_region
          %s232 = ssub.s32 6144, 6144
          %233 = vsyncadd [#allocation6], %s232
          %s234 = sshll.u32 [#allocation7], 4
          %s235 = int_to_ptr.vmem [resolvable:$true] %s234
          %240 = dma.hbm_to_vmem [thread:$0]  %s2, 6144, %s235, [#allocation6], 384, 384, 24
        $region20: #{tpu_custom_call.1} parent=11 // pred_fallthru
          _
        // Predicated region
        $region21: #{tpu_custom_call.1} parent=11 // pred_check
          %p241 = pneg %p111
        $region22: #{tpu_custom_call.1} parent=11 // pred_check_branch
          %243 = sbr.rel (%p241) target = $region24
        $region23: #{tpu_custom_call.1} parent=11 // pred_region
          %s245 = ssub.s32 2048, 2048
          %246 = vsyncadd [#allocation9], %s245
          %s247 = sshll.u32 [#allocation8], 4
          %s248 = int_to_ptr.vmem [resolvable:$true] %s247
          %253 = dma.hbm_to_vmem [thread:$0]  %s3, 2048, %s248, [#allocation9], 128, 128, 8
        $region24: #{tpu_custom_call.1} parent=11 // pred_fallthru
          _
        // Predicated region
        $region25: #{tpu_custom_call.1} parent=11 // pred_check
          %p254 = pneg %p132
        $region26: #{tpu_custom_call.1} parent=11 // pred_check_branch
          %256 = sbr.rel (%p254) target = $region28
        $region27: #{tpu_custom_call.1} parent=11 // pred_region
          %s258 = ssub.s32 4096, 4096
          %259 = vsyncadd [#allocation9], %s258
          %s260 = sshll.u32 [#allocation10], 4
          %s261 = int_to_ptr.vmem [resolvable:$true] %s260
          %266 = dma.hbm_to_vmem [thread:$0]  %s4, 4096, %s261, [#allocation9], 256, 256, 16
        $region28: #{tpu_custom_call.1} parent=11 // pred_fallthru
          _
        // Predicated region
        $region29: #{tpu_custom_call.1} parent=11 // pred_check
          %p267 = pneg %p153
        $region30: #{tpu_custom_call.1} parent=11 // pred_check_branch
          %269 = sbr.rel (%p267) target = $region32
        $region31: #{tpu_custom_call.1} parent=11 // pred_region
          %s271 = ssub.s32 4096, 4096
          %272 = vsyncadd [#allocation12], %s271
          %s273 = sshll.u32 [#allocation11], 4
          %s274 = int_to_ptr.vmem [resolvable:$true] %s273
          %279 = dma.hbm_to_vmem [thread:$0]  %s5, 4096, %s274, [#allocation12], 128, 128, 8
        $region32: #{tpu_custom_call.1} parent=11 // pred_fallthru
          _
        // Predicated region
        $region33: #{tpu_custom_call.1} parent=11 // pred_check
          %p280 = pneg %p174
        $region34: #{tpu_custom_call.1} parent=11 // pred_check_branch
          %282 = sbr.rel (%p280) target = $region36
        $region35: #{tpu_custom_call.1} parent=11 // pred_region
          %s284 = ssub.s32 768, 768
          %285 = vsyncadd [#allocation12], %s284
          %s286 = sshll.u32 [#allocation13], 4
          %s287 = int_to_ptr.vmem [resolvable:$true] %s286
          %292 = dma.hbm_to_vmem [thread:$0]  %s6, 768, %s287, [#allocation12], 384, 384, 24
        $region36: #{tpu_custom_call.1} parent=11 // pred_fallthru
          _
      $region12: #{tpu_custom_call.1} parent=5 // pred_fallthru
        _
      %p293 = scmp.lt.s32.totalorder %s22, 2
      // Predicated region
      $region37: #{tpu_custom_call.1} parent=5 // pred_check
        %p294 = pneg %p293
      $region38: #{tpu_custom_call.1} parent=5 // pred_check_branch
        %296 = sbr.rel (%p294) target = $region40
      $region39: #{tpu_custom_call.1} parent=5 // pred_region
        // Predicated region
        $region41: #{tpu_custom_call.1} parent=39 // pred_check
          %p297 = pneg %p42
        $region42: #{tpu_custom_call.1} parent=39 // pred_check_branch
          %299 = sbr.rel (%p297) target = $region44
        $region43: #{tpu_custom_call.1} parent=39 // pred_region
          %s300 = sand.u32 %s32, 1
          %s301 = scalar_lea.sflag [#allocation3], %s300
          %s302 = sand.u32 %s32, 1
          %s303 = smul.addr %s302, 8
          %s304 = scalar_lea.vmem [#allocation2], %s303
          %s306 = ssub.s32 128, 128
          %307 = vsyncadd %s301, %s306
          %s308 = smul.addr %s22, 128
          %s309 = scalar_lea.hbm %s0, %s308
          %s311 = sshll.u32 %s304, 4
          %s312 = int_to_ptr.vmem [resolvable:$true] %s311
          %314 = dma.hbm_to_vmem [thread:$0]  %s309, 128, %s312, %s301
        $region44: #{tpu_custom_call.1} parent=39 // pred_fallthru
          _
      $region40: #{tpu_custom_call.1} parent=5 // pred_fallthru
        _
      %p315 = scmp.le.s32.totalorder 1, %s22
      %p316 = scmp.lt.s32.totalorder %s22, 3
      %p317 = pnand %p315, %p316
      %p318 = pneg %p317
      // Predicated region
      $region45: #{tpu_custom_call.1} parent=5 // pred_check
        _
      $region46: #{tpu_custom_call.1} parent=5 // pred_check_branch
        %320 = sbr.rel (%p317) target = $region48
      $region47: #{tpu_custom_call.1} parent=5 // pred_region
        %s321 = ssub.s32 %s22, 1
        %s322 = sand.u32 %s35, 1
        %s323 = scalar_lea.sflag [#allocation3], %s322
        %s324 = sand.u32 %s35, 1
        %s325 = smul.addr %s324, 8
        %s326 = scalar_lea.vmem [#allocation2], %s325
        // Predicated region
        $region49: #{tpu_custom_call.1} parent=47 // pred_check
          %p327 = pneg %p48
        $region50: #{tpu_custom_call.1} parent=47 // pred_check_branch
          %329 = sbr.rel (%p327) target = $region52
        $region51: #{tpu_custom_call.1} parent=47 // pred_region
          %330 = dma.done %s323, 128
        $region52: #{tpu_custom_call.1} parent=47 // pred_fallthru
          _
        // Predicated region
        $region53: #{tpu_custom_call.1} parent=47 // pred_check
          %p331 = pneg %p69
        $region54: #{tpu_custom_call.1} parent=47 // pred_check_branch
          %333 = sbr.rel (%p331) target = $region56
        $region55: #{tpu_custom_call.1} parent=47 // pred_region
          %334 = dma.done [#allocation6], 2048
        $region56: #{tpu_custom_call.1} parent=47 // pred_fallthru
          _
        // Predicated region
        $region57: #{tpu_custom_call.1} parent=47 // pred_check
          %p335 = pneg %p90
        $region58: #{tpu_custom_call.1} parent=47 // pred_check_branch
          %337 = sbr.rel (%p335) target = $region60
        $region59: #{tpu_custom_call.1} parent=47 // pred_region
          %338 = dma.done [#allocation6], 6144
        $region60: #{tpu_custom_call.1} parent=47 // pred_fallthru
          _
        // Predicated region
        $region61: #{tpu_custom_call.1} parent=47 // pred_check
          %p339 = pneg %p111
        $region62: #{tpu_custom_call.1} parent=47 // pred_check_branch
          %341 = sbr.rel (%p339) target = $region64
        $region63: #{tpu_custom_call.1} parent=47 // pred_region
          %342 = dma.done [#allocation9], 2048
        $region64: #{tpu_custom_call.1} parent=47 // pred_fallthru
          _
        // Predicated region
        $region65: #{tpu_custom_call.1} parent=47 // pred_check
          %p343 = pneg %p132
        $region66: #{tpu_custom_call.1} parent=47 // pred_check_branch
          %345 = sbr.rel (%p343) target = $region68
        $region67: #{tpu_custom_call.1} parent=47 // pred_region
          %346 = dma.done [#allocation9], 4096
        $region68: #{tpu_custom_call.1} parent=47 // pred_fallthru
          _
        // Predicated region
        $region69: #{tpu_custom_call.1} parent=47 // pred_check
          %p347 = pneg %p153
        $region70: #{tpu_custom_call.1} parent=47 // pred_check_branch
          %349 = sbr.rel (%p347) target = $region72
        $region71: #{tpu_custom_call.1} parent=47 // pred_region
          %350 = dma.done [#allocation12], 4096
        $region72: #{tpu_custom_call.1} parent=47 // pred_fallthru
          _
        // Predicated region
        $region73: #{tpu_custom_call.1} parent=47 // pred_check
          %p351 = pneg %p174
        $region74: #{tpu_custom_call.1} parent=47 // pred_check_branch
          %353 = sbr.rel (%p351) target = $region76
        $region75: #{tpu_custom_call.1} parent=47 // pred_region
          %354 = dma.done [#allocation12], 768
        $region76: #{tpu_custom_call.1} parent=47 // pred_fallthru
          _
        %s355 = sand.u32 %s35, 1
        %s356 = scalar_lea.sflag [#allocation3], %s355
        %s357 = sand.u32 %s35, 1
        %s358 = smul.addr %s357, 8
        %s359 = scalar_lea.vmem [#allocation2], %s358
        %p360 = pneg %p48
        %p361 = pneg %p45
        %p362 = pneg %p69
        %p363 = pneg %p66
        %p364 = pneg %p90
        %p365 = pneg %p87
        %p366 = pneg %p111
        %p367 = pneg %p108
        %p368 = pneg %p132
        %p369 = pneg %p129
        %p370 = pneg %p153
        %p371 = pneg %p150
        %p372 = pneg %p174
        %p373 = pneg %p171
        %p374 = pneg %p200
        %p375 = pneg %p197
        %s376 = sand.u32 %s187, 1
        %s377 = scalar_lea.sflag [#allocation4], %s376
        %s378 = sand.u32 %s187, 1
        %s379 = scalar_lea.vmem [#allocation14], %s378
        %v380 = vld [vmem:[#allocation13] ss:$0 sm:$0xff]
        %v381 = vld [vmem:[#allocation13 + $0x1] ss:$0 sm:$0xff]
        %v382 = vld [vmem:[#allocation13 + $0x2] ss:$0 sm:$0xff]
        %v383 = vld [vmem:[#allocation13 + $0x3] ss:$0 sm:$0xff]
        %v384 = vld [vmem:[#allocation13 + $0x4] ss:$0 sm:$0xff]
        %v385 = vld [vmem:[#allocation13 + $0x5] ss:$0 sm:$0xff]
        %v386 = vld [vmem:[#allocation13 + $0x6] ss:$0 sm:$0xff]
        %v387 = vld [vmem:[#allocation13 + $0x7] ss:$0 sm:$0xff]
        %s388 = scalar_lea.vmem [#allocation13], 26
        %v389 = vld [vmem:[%s388] ss:$8 sm:$0x3]
        %s390 = scalar_lea.vmem [#allocation13], 27
        %v391 = vld [vmem:[%s390] ss:$8 sm:$0x7]
        %v392 = vld [vmem:[%s326] sm:$0xff]
        %v393 = vld [vmem:[#allocation5] sm:$0xff]
        %v394 = vld [vmem:[#allocation5 + $0x8] sm:$0xff]
        %v395 = vld [vmem:[#allocation5 + $0x10] sm:$0xff]
        %v396 = vld [vmem:[#allocation5 + $0x18] sm:$0xff]
        %v397 = vld [vmem:[#allocation5 + $0x20] sm:$0xff]
        %v398 = vld [vmem:[#allocation5 + $0x28] sm:$0xff]
        %v399 = vld [vmem:[#allocation5 + $0x30] sm:$0xff]
        %v400 = vld [vmem:[#allocation5 + $0x38] sm:$0xff]
        %v401 = vld [vmem:[#allocation5 + $0x40] sm:$0xff]
        %v402 = vld [vmem:[#allocation5 + $0x48] sm:$0xff]
        %v403 = vld [vmem:[#allocation5 + $0x50] sm:$0xff]
        %v404 = vld [vmem:[#allocation5 + $0x58] sm:$0xff]
        %v405 = vld [vmem:[#allocation5 + $0x60] sm:$0xff]
        %v406 = vld [vmem:[#allocation5 + $0x68] sm:$0xff]
        %v407 = vld [vmem:[#allocation5 + $0x70] sm:$0xff]
        %v408 = vld [vmem:[#allocation5 + $0x78] sm:$0xff]
        %409 = vmatprep.subr.mxu0 0.0
        %410 = vmatpush1.msra.mxu0 %v393
        %411 = vmatprep.subr.mxu0 0.0
        %412 = vmatpush1.msra.mxu0 %v394
        %413 = vmatprep.subr.mxu0 0.0
        %414 = vmatpush1.msra.mxu0 %v395
        %415 = vmatprep.subr.mxu0 0.0
        %416 = vmatpush1.msra.mxu0 %v396
        %417 = vmatprep.subr.mxu0 0.0
        %418 = vmatpush1.msra.mxu0 %v397
        %419 = vmatprep.subr.mxu0 0.0
        %420 = vmatpush1.msra.mxu0 %v398
        %421 = vmatprep.subr.mxu0 0.0
        %422 = vmatpush1.msra.mxu0 %v399
        %423 = vmatprep.subr.mxu0 0.0
        %424 = vmatpush1.msra.mxu0 %v400
        %425 = vmatprep.subr.mxu0 0.0
        %426 = vmatpush1.msra.mxu0 %v401
        %427 = vmatprep.subr.mxu0 0.0
        %428 = vmatpush1.msra.mxu0 %v402
        %429 = vmatprep.subr.mxu0 0.0
        %430 = vmatpush1.msra.mxu0 %v403
        %431 = vmatprep.subr.mxu0 0.0
        %432 = vmatpush1.msra.mxu0 %v404
        %433 = vmatprep.subr.mxu0 0.0
        %434 = vmatpush1.msra.mxu0 %v405
        %435 = vmatprep.subr.mxu0 0.0
        %436 = vmatpush1.msra.mxu0 %v406
        %437 = vmatprep.subr.mxu0 0.0
        %438 = vmatpush1.msra.mxu0 %v407
        %439 = vmatprep.subr.mxu0 0.0
        %440 = vmatpush1.msra.mxu0 %v408
        %441 = vmatprep.subr.mxu0 0.0
        %442 = vmatpush1.msra.mxu0 0.0
        %443 = vmatprep.subr.mxu0 0.0
        %444 = vmatpush1.msra.mxu0 0.0
        %445 = vmatprep.subr.mxu0 0.0
        %446 = vmatpush1.msra.mxu0 0.0
        %447 = vmatprep.subr.mxu0 0.0
        %448 = vmatpush1.msra.mxu0 0.0
        %449 = vmatprep.subr.mxu0 0.0
        %450 = vmatpush1.msra.mxu0 0.0
        %451 = vmatprep.subr.mxu0 0.0
        %452 = vmatpush1.msra.mxu0 0.0
        %453 = vmatprep.subr.mxu0 0.0
        %454 = vmatpush1.msra.mxu0 0.0
        %455 = vmatprep.subr.mxu0 0.0
        %456 = vmatpush1.msra.mxu0 0.0
        %457 = vmatprep.subr.mxu0 0.0
        %458 = vmatpush1.msra.mxu0 0.0
        %459 = vmatprep.subr.mxu0 0.0
        %460 = vmatpush1.msra.mxu0 0.0
        %461 = vmatprep.subr.mxu0 0.0
        %462 = vmatpush1.msra.mxu0 0.0
        %463 = vmatprep.subr.mxu0 0.0
        %464 = vmatpush1.msra.mxu0 0.0
        %465 = vmatprep.subr.mxu0 0.0
        %466 = vmatpush1.msra.mxu0 0.0
        %467 = vmatprep.subr.mxu0 0.0
        %468 = vmatpush1.msra.mxu0 0.0
        %469 = vmatprep.subr.mxu0 0.0
        %470 = vmatpush1.msra.mxu0 0.0
        %471 = vmatprep.subr.mxu0 0.0
        %472 = vmatpush1.msra.mxu0 0.0
        %473 = vmatprep.mubr.f32.mxu0 0.0
        %474 = vmatmul.mubr.f32.gmra.mrb[0].mxu0 %v392
        %v475 = vpop.f32.mrb[0].mxu0
        %v476 = vadd.f32 %v380, %v475
        %v477 = vpop.f32.mrb[0].mxu0
        %478 = vdwg.mxu0
        %v479 = vld [vmem:[#allocation7] sm:$0xff]
        %v480 = vld [vmem:[#allocation7 + $0x8] sm:$0xff]
        %v481 = vld [vmem:[#allocation7 + $0x10] sm:$0xff]
        %v482 = vld [vmem:[#allocation7 + $0x18] sm:$0xff]
        %v483 = vld [vmem:[#allocation7 + $0x20] sm:$0xff]
        %v484 = vld [vmem:[#allocation7 + $0x28] sm:$0xff]
        %v485 = vld [vmem:[#allocation7 + $0x30] sm:$0xff]
        %v486 = vld [vmem:[#allocation7 + $0x38] sm:$0xff]
        %v487 = vld [vmem:[#allocation7 + $0x40] sm:$0xff]
        %v488 = vld [vmem:[#allocation7 + $0x48] sm:$0xff]
        %v489 = vld [vmem:[#allocation7 + $0x50] sm:$0xff]
        %v490 = vld [vmem:[#allocation7 + $0x58] sm:$0xff]
        %v491 = vld [vmem:[#allocation7 + $0x60] sm:$0xff]
        %v492 = vld [vmem:[#allocation7 + $0x68] sm:$0xff]
        %v493 = vld [vmem:[#allocation7 + $0x70] sm:$0xff]
        %v494 = vld [vmem:[#allocation7 + $0x78] sm:$0xff]
        %v495 = vld [vmem:[#allocation7 + $0x80] sm:$0xff]
        %v496 = vld [vmem:[#allocation7 + $0x88] sm:$0xff]
        %v497 = vld [vmem:[#allocation7 + $0x90] sm:$0xff]
        %v498 = vld [vmem:[#allocation7 + $0x98] sm:$0xff]
        %v499 = vld [vmem:[#allocation7 + $0xa0] sm:$0xff]
        %v500 = vld [vmem:[#allocation7 + $0xa8] sm:$0xff]
        %v501 = vld [vmem:[#allocation7 + $0xb0] sm:$0xff]
        %v502 = vld [vmem:[#allocation7 + $0xb8] sm:$0xff]
        %v503 = vld [vmem:[#allocation7 + $0xc0] sm:$0xff]
        %v504 = vld [vmem:[#allocation7 + $0xc8] sm:$0xff]
        %v505 = vld [vmem:[#allocation7 + $0xd0] sm:$0xff]
        %v506 = vld [vmem:[#allocation7 + $0xd8] sm:$0xff]
        %v507 = vld [vmem:[#allocation7 + $0xe0] sm:$0xff]
        %v508 = vld [vmem:[#allocation7 + $0xe8] sm:$0xff]
        %v509 = vld [vmem:[#allocation7 + $0xf0] sm:$0xff]
        %v510 = vld [vmem:[#allocation7 + $0xf8] sm:$0xff]
        %v511 = vld [vmem:[#allocation7 + $0x100] sm:$0xff]
        %v512 = vld [vmem:[#allocation7 + $0x108] sm:$0xff]
        %v513 = vld [vmem:[#allocation7 + $0x110] sm:$0xff]
        %v514 = vld [vmem:[#allocation7 + $0x118] sm:$0xff]
        %v515 = vld [vmem:[#allocation7 + $0x120] sm:$0xff]
        %v516 = vld [vmem:[#allocation7 + $0x128] sm:$0xff]
        %v517 = vld [vmem:[#allocation7 + $0x130] sm:$0xff]
        %v518 = vld [vmem:[#allocation7 + $0x138] sm:$0xff]
        %v519 = vld [vmem:[#allocation7 + $0x140] sm:$0xff]
        %v520 = vld [vmem:[#allocation7 + $0x148] sm:$0xff]
        %v521 = vld [vmem:[#allocation7 + $0x150] sm:$0xff]
        %v522 = vld [vmem:[#allocation7 + $0x158] sm:$0xff]
        %v523 = vld [vmem:[#allocation7 + $0x160] sm:$0xff]
        %v524 = vld [vmem:[#allocation7 + $0x168] sm:$0xff]
        %v525 = vld [vmem:[#allocation7 + $0x170] sm:$0xff]
        %v526 = vld [vmem:[#allocation7 + $0x178] sm:$0xff]
        %v528 = vlaneseq
        %v529 = vshrl.u32 %v528, 7
        %v530 = vsub.s32 0, %v529
        %v531 = vrot.slane %v391, %v530
        %v532 = vlaneseq
        %v533 = vshrl.u32 %v532, 7
        %v534 = vsub.s32 1, %v533
        %v535 = vrot.slane %v391, %v534
        %v536 = vlaneseq
        %v537 = vshrl.u32 %v536, 7
        %v538 = vsub.s32 2, %v537
        %v539 = vrot.slane %v391, %v538
        %543 = vmatprep.subr.mxu0 %v480
        %544 = vmatpush1.msra.mxu0 %v479
        %545 = vmatprep.subr.mxu0 %v483
        %546 = vmatpush1.msra.mxu0 %v482
        %547 = vmatprep.subr.mxu0 %v486
        %548 = vmatpush1.msra.mxu0 %v485
        %549 = vmatprep.subr.mxu0 %v489
        %550 = vmatpush1.msra.mxu0 %v488
        %551 = vmatprep.subr.mxu0 %v492
        %552 = vmatpush1.msra.mxu0 %v491
        %553 = vmatprep.subr.mxu0 %v495
        %554 = vmatpush1.msra.mxu0 %v494
        %555 = vmatprep.subr.mxu0 %v498
        %556 = vmatpush1.msra.mxu0 %v497
        %557 = vmatprep.subr.mxu0 %v501
        %558 = vmatpush1.msra.mxu0 %v500
        %559 = vmatprep.subr.mxu0 %v504
        %560 = vmatpush1.msra.mxu0 %v503
        %561 = vmatprep.subr.mxu0 %v507
        %562 = vmatpush1.msra.mxu0 %v506
        %563 = vmatprep.subr.mxu0 %v510
        %564 = vmatpush1.msra.mxu0 %v509
        %565 = vmatprep.subr.mxu0 %v513
        %566 = vmatpush1.msra.mxu0 %v512
        %567 = vmatprep.subr.mxu0 %v516
        %568 = vmatpush1.msra.mxu0 %v515
        %569 = vmatprep.subr.mxu0 %v519
        %570 = vmatpush1.msra.mxu0 %v518
        %571 = vmatprep.subr.mxu0 %v522
        %572 = vmatpush1.msra.mxu0 %v521
        %573 = vmatprep.subr.mxu0 %v525
        %574 = vmatpush1.msra.mxu0 %v524
        %575 = vmatprep.subr.mxu0 0.0
        %576 = vmatpush1.msra.mxu0 0.0
        %577 = vmatprep.subr.mxu0 0.0
        %578 = vmatpush1.msra.mxu0 0.0
        %579 = vmatprep.subr.mxu0 0.0
        %580 = vmatpush1.msra.mxu0 0.0
        %581 = vmatprep.subr.mxu0 0.0
        %582 = vmatpush1.msra.mxu0 0.0
        %583 = vmatprep.subr.mxu0 0.0
        %584 = vmatpush1.msra.mxu0 0.0
        %585 = vmatprep.subr.mxu0 0.0
        %586 = vmatpush1.msra.mxu0 0.0
        %587 = vmatprep.subr.mxu0 0.0
        %588 = vmatpush1.msra.mxu0 0.0
        %589 = vmatprep.subr.mxu0 0.0
        %590 = vmatpush1.msra.mxu0 0.0
        %591 = vmatprep.subr.mxu0 0.0
        %592 = vmatpush1.msra.mxu0 0.0
        %593 = vmatprep.subr.mxu0 0.0
        %594 = vmatpush1.msra.mxu0 0.0
        %595 = vmatprep.subr.mxu0 0.0
        %596 = vmatpush1.msra.mxu0 0.0
        %597 = vmatprep.subr.mxu0 0.0
        %598 = vmatpush1.msra.mxu0 0.0
        %599 = vmatprep.subr.mxu0 0.0
        %600 = vmatpush1.msra.mxu0 0.0
        %601 = vmatprep.subr.mxu0 0.0
        %602 = vmatpush1.msra.mxu0 0.0
        %603 = vmatprep.subr.mxu0 0.0
        %604 = vmatpush1.msra.mxu0 0.0
        %605 = vmatprep.subr.mxu0 0.0
        %606 = vmatpush1.msra.mxu0 0.0
        %607 = vmatprep.mubr.f32.mxu0 0.0
        %608 = vmatmul.mubr.f32.gmra.mrb[0].mxu0 %v476
        %v609 = vpop.f32.mrb[0].mxu0
        %v610 = vadd.f32 %v531, %v609
        %v611 = vpop.f32.mrb[0].mxu0
        %v612 = vadd.f32 %v535, %v611
        %613 = vdwg.mxu0
        %614 = vmatprep.subr.mxu0 0.0
        %615 = vmatpush1.msra.mxu0 %v481
        %616 = vmatprep.subr.mxu0 0.0
        %617 = vmatpush1.msra.mxu0 %v484
        %618 = vmatprep.subr.mxu0 0.0
        %619 = vmatpush1.msra.mxu0 %v487
        %620 = vmatprep.subr.mxu0 0.0
        %621 = vmatpush1.msra.mxu0 %v490
        %622 = vmatprep.subr.mxu0 0.0
        %623 = vmatpush1.msra.mxu0 %v493
        %624 = vmatprep.subr.mxu0 0.0
        %625 = vmatpush1.msra.mxu0 %v496
        %626 = vmatprep.subr.mxu0 0.0
        %627 = vmatpush1.msra.mxu0 %v499
        %628 = vmatprep.subr.mxu0 0.0
        %629 = vmatpush1.msra.mxu0 %v502
        %630 = vmatprep.subr.mxu0 0.0
        %631 = vmatpush1.msra.mxu0 %v505
        %632 = vmatprep.subr.mxu0 0.0
        %633 = vmatpush1.msra.mxu0 %v508
        %634 = vmatprep.subr.mxu0 0.0
        %635 = vmatpush1.msra.mxu0 %v511
        %636 = vmatprep.subr.mxu0 0.0
        %637 = vmatpush1.msra.mxu0 %v514
        %638 = vmatprep.subr.mxu0 0.0
        %639 = vmatpush1.msra.mxu0 %v517
        %640 = vmatprep.subr.mxu0 0.0
        %641 = vmatpush1.msra.mxu0 %v520
        %642 = vmatprep.subr.mxu0 0.0
        %643 = vmatpush1.msra.mxu0 %v523
        %644 = vmatprep.subr.mxu0 0.0
        %645 = vmatpush1.msra.mxu0 %v526
        %646 = vmatprep.subr.mxu0 0.0
        %647 = vmatpush1.msra.mxu0 0.0
        %648 = vmatprep.subr.mxu0 0.0
        %649 = vmatpush1.msra.mxu0 0.0
        %650 = vmatprep.subr.mxu0 0.0
        %651 = vmatpush1.msra.mxu0 0.0
        %652 = vmatprep.subr.mxu0 0.0
        %653 = vmatpush1.msra.mxu0 0.0
        %654 = vmatprep.subr.mxu0 0.0
        %655 = vmatpush1.msra.mxu0 0.0
        %656 = vmatprep.subr.mxu0 0.0
        %657 = vmatpush1.msra.mxu0 0.0
        %658 = vmatprep.subr.mxu0 0.0
        %659 = vmatpush1.msra.mxu0 0.0
        %660 = vmatprep.subr.mxu0 0.0
        %661 = vmatpush1.msra.mxu0 0.0
        %662 = vmatprep.subr.mxu0 0.0
        %663 = vmatpush1.msra.mxu0 0.0
        %664 = vmatprep.subr.mxu0 0.0
        %665 = vmatpush1.msra.mxu0 0.0
        %666 = vmatprep.subr.mxu0 0.0
        %667 = vmatpush1.msra.mxu0 0.0
        %668 = vmatprep.subr.mxu0 0.0
        %669 = vmatpush1.msra.mxu0 0.0
        %670 = vmatprep.subr.mxu0 0.0
        %671 = vmatpush1.msra.mxu0 0.0
        %672 = vmatprep.subr.mxu0 0.0
        %673 = vmatpush1.msra.mxu0 0.0
        %674 = vmatprep.subr.mxu0 0.0
        %675 = vmatpush1.msra.mxu0 0.0
        %676 = vmatprep.subr.mxu0 0.0
        %677 = vmatpush1.msra.mxu0 0.0
        %678 = vmatprep.mubr.f32.mxu0 0.0
        %679 = vmatmul.mubr.f32.gmra.mrb[0].mxu0 %v476
        %v680 = vpop.f32.mrb[0].mxu0
        %v681 = vadd.f32 %v539, %v680
        %v682 = vpop.f32.mrb[0].mxu0
        %683 = vdwg.mxu0
        %v684 = vld [vmem:[#allocation13 + $0x18] ss:$0 sm:$0xff]
        %v685 = vmul.f32 %v610, %v684
        %v686 = vmul.f32 %v681, %v684
        %687 = vmatprep.subr.mxu0 0.0
        %688 = vmatpush1.xpose.msra.mxu0 %v612
        %689 = vmatprep.subr.mxu0 0.0
        %690 = vmatpush1.xpose.msra.mxu0 0.0
        %691 = vmatprep.subr.mxu0 0.0
        %692 = vmatpush1.xpose.msra.mxu0 0.0
        %693 = vmatprep.subr.mxu0 0.0
        %694 = vmatpush1.xpose.msra.mxu0 0.0
        %695 = vmatprep.subr.mxu0 0.0
        %696 = vmatpush1.xpose.msra.mxu0 0.0
        %697 = vmatprep.subr.mxu0 0.0
        %698 = vmatpush1.xpose.msra.mxu0 0.0
        %699 = vmatprep.subr.mxu0 0.0
        %700 = vmatpush1.xpose.msra.mxu0 0.0
        %701 = vmatprep.subr.mxu0 0.0
        %702 = vmatpush1.xpose.msra.mxu0 0.0
        %703 = vmatprep.subr.mxu0 0.0
        %704 = vmatpush1.xpose.msra.mxu0 0.0
        %705 = vmatprep.subr.mxu0 0.0
        %706 = vmatpush1.xpose.msra.mxu0 0.0
        %707 = vmatprep.subr.mxu0 0.0
        %708 = vmatpush1.xpose.msra.mxu0 0.0
        %709 = vmatprep.subr.mxu0 0.0
        %710 = vmatpush1.xpose.msra.mxu0 0.0
        %711 = vmatprep.subr.mxu0 0.0
        %712 = vmatpush1.xpose.msra.mxu0 0.0
        %713 = vmatprep.subr.mxu0 0.0
        %714 = vmatpush1.xpose.msra.mxu0 0.0
        %715 = vmatprep.subr.mxu0 0.0
        %716 = vmatpush1.xpose.msra.mxu0 0.0
        %717 = vmatprep.subr.mxu0 0.0
        %718 = vmatpush1.xpose.msra.mxu0 0.0
        %719 = vmatprep.subr.mxu0 0.0
        %720 = vmatpush1.xpose.msra.mxu0 0.0
        %721 = vmatprep.subr.mxu0 0.0
        %722 = vmatpush1.xpose.msra.mxu0 0.0
        %723 = vmatprep.subr.mxu0 0.0
        %724 = vmatpush1.xpose.msra.mxu0 0.0
        %725 = vmatprep.subr.mxu0 0.0
        %726 = vmatpush1.xpose.msra.mxu0 0.0
        %727 = vmatprep.subr.mxu0 0.0
        %728 = vmatpush1.xpose.msra.mxu0 0.0
        %729 = vmatprep.subr.mxu0 0.0
        %730 = vmatpush1.xpose.msra.mxu0 0.0
        %731 = vmatprep.subr.mxu0 0.0
        %732 = vmatpush1.xpose.msra.mxu0 0.0
        %733 = vmatprep.subr.mxu0 0.0
        %734 = vmatpush1.xpose.msra.mxu0 0.0
        %735 = vmatprep.subr.mxu0 0.0
        %736 = vmatpush1.xpose.msra.mxu0 0.0
        %737 = vmatprep.subr.mxu0 0.0
        %738 = vmatpush1.xpose.msra.mxu0 0.0
        %739 = vmatprep.subr.mxu0 0.0
        %740 = vmatpush1.xpose.msra.mxu0 0.0
        %741 = vmatprep.subr.mxu0 0.0
        %742 = vmatpush1.xpose.msra.mxu0 0.0
        %743 = vmatprep.subr.mxu0 0.0
        %744 = vmatpush1.xpose.msra.mxu0 0.0
        %745 = vmatprep.subr.mxu0 0.0
        %746 = vmatpush1.xpose.msra.mxu0 0.0
        %747 = vmatprep.subr.mxu0 0.0
        %748 = vmatpush1.xpose.msra.mxu0 0.0
        %749 = vmatprep.subr.mxu0 0.0
        %750 = vmatpush1.xpose.msra.mxu0 0.0
        %751 = vmatprep.mubr.f32.mxu0 0.0
        %752 = vmatmul.mubr.f32.gmra.mrb[0].mxu0 %v685
        %v753 = vpop.f32.mrb[0].mxu0
        %v754 = vadd.f32 0.0, %v753
        %v755 = vpop.f32.mrb[0].mxu0
        %756 = vdwg.mxu0
        %vm757 = vcmask 64512
        %v758 = vsel %vm757, %v754, -inf
        %759 = vmax.xlane.f32.xlu0 %v758
        %v760 = vpop.xlane.xlu0 %759
        %v761 = vsub.f32 %v754, %v760
        %v762 = vmul.f32 %v761, 1.442695
        %v763 = vpow.pop %v762
        %v764 = vsel %vm757, %v763, 0.0
        %765 = vadd.xlane.f32.xlu0 %v764
        %v766 = vpop.xlane.xlu0 %765
        %v767 = vrcp.pop %v766
        %v768 = vmul.f32 %v763, %v767
        %v769 = vld [vmem:[#allocation13 + $0x19] ss:$0 sm:$0xff]
        %v770 = vmul.f32 %v610, %v769
        %v771 = vmul.f32 %v681, %v769
        %772 = vmatprep.subr.mxu0 0.0
        %773 = vmatpush1.xpose.msra.mxu0 %v612
        %774 = vmatprep.subr.mxu0 0.0
        %775 = vmatpush1.xpose.msra.mxu0 0.0
        %776 = vmatprep.subr.mxu0 0.0
        %777 = vmatpush1.xpose.msra.mxu0 0.0
        %778 = vmatprep.subr.mxu0 0.0
        %779 = vmatpush1.xpose.msra.mxu0 0.0
        %780 = vmatprep.subr.mxu0 0.0
        %781 = vmatpush1.xpose.msra.mxu0 0.0
        %782 = vmatprep.subr.mxu0 0.0
        %783 = vmatpush1.xpose.msra.mxu0 0.0
        %784 = vmatprep.subr.mxu0 0.0
        %785 = vmatpush1.xpose.msra.mxu0 0.0
        %786 = vmatprep.subr.mxu0 0.0
        %787 = vmatpush1.xpose.msra.mxu0 0.0
        %788 = vmatprep.subr.mxu0 0.0
        %789 = vmatpush1.xpose.msra.mxu0 0.0
        %790 = vmatprep.subr.mxu0 0.0
        %791 = vmatpush1.xpose.msra.mxu0 0.0
        %792 = vmatprep.subr.mxu0 0.0
        %793 = vmatpush1.xpose.msra.mxu0 0.0
        %794 = vmatprep.subr.mxu0 0.0
        %795 = vmatpush1.xpose.msra.mxu0 0.0
        %796 = vmatprep.subr.mxu0 0.0
        %797 = vmatpush1.xpose.msra.mxu0 0.0
        %798 = vmatprep.subr.mxu0 0.0
        %799 = vmatpush1.xpose.msra.mxu0 0.0
        %800 = vmatprep.subr.mxu0 0.0
        %801 = vmatpush1.xpose.msra.mxu0 0.0
        %802 = vmatprep.subr.mxu0 0.0
        %803 = vmatpush1.xpose.msra.mxu0 0.0
        %804 = vmatprep.subr.mxu0 0.0
        %805 = vmatpush1.xpose.msra.mxu0 0.0
        %806 = vmatprep.subr.mxu0 0.0
        %807 = vmatpush1.xpose.msra.mxu0 0.0
        %808 = vmatprep.subr.mxu0 0.0
        %809 = vmatpush1.xpose.msra.mxu0 0.0
        %810 = vmatprep.subr.mxu0 0.0
        %811 = vmatpush1.xpose.msra.mxu0 0.0
        %812 = vmatprep.subr.mxu0 0.0
        %813 = vmatpush1.xpose.msra.mxu0 0.0
        %814 = vmatprep.subr.mxu0 0.0
        %815 = vmatpush1.xpose.msra.mxu0 0.0
        %816 = vmatprep.subr.mxu0 0.0
        %817 = vmatpush1.xpose.msra.mxu0 0.0
        %818 = vmatprep.subr.mxu0 0.0
        %819 = vmatpush1.xpose.msra.mxu0 0.0
        %820 = vmatprep.subr.mxu0 0.0
        %821 = vmatpush1.xpose.msra.mxu0 0.0
        %822 = vmatprep.subr.mxu0 0.0
        %823 = vmatpush1.xpose.msra.mxu0 0.0
        %824 = vmatprep.subr.mxu0 0.0
        %825 = vmatpush1.xpose.msra.mxu0 0.0
        %826 = vmatprep.subr.mxu0 0.0
        %827 = vmatpush1.xpose.msra.mxu0 0.0
        %828 = vmatprep.subr.mxu0 0.0
        %829 = vmatpush1.xpose.msra.mxu0 0.0
        %830 = vmatprep.subr.mxu0 0.0
        %831 = vmatpush1.xpose.msra.mxu0 0.0
        %832 = vmatprep.subr.mxu0 0.0
        %833 = vmatpush1.xpose.msra.mxu0 0.0
        %834 = vmatprep.subr.mxu0 0.0
        %835 = vmatpush1.xpose.msra.mxu0 0.0
        %836 = vmatprep.mubr.f32.mxu0 0.0
        %837 = vmatmul.mubr.f32.gmra.mrb[0].mxu0 %v770
        %v838 = vpop.f32.mrb[0].mxu0
        %v839 = vadd.f32 0.0, %v838
        %v840 = vpop.f32.mrb[0].mxu0
        %841 = vdwg.mxu0
        %v842 = vsel %vm757, %v839, -inf
        %843 = vmax.xlane.f32.xlu0 %v842
        %v844 = vpop.xlane.xlu0 %843
        %v845 = vsub.f32 %v839, %v844
        %v846 = vmul.f32 %v845, 1.442695
        %v847 = vpow.pop %v846
        %v848 = vsel %vm757, %v847, 0.0
        %849 = vadd.xlane.f32.xlu0 %v848
        %v850 = vpop.xlane.xlu0 %849
        %v851 = vrcp.pop %v850
        %v852 = vmul.f32 %v847, %v851
        %v854 = vsel %vm757, %v852, 0
        %856 = vmatprep.subr.mxu0 0.0
        %857 = vmatpush1.msra.mxu0 %v771
        %858 = vmatprep.subr.mxu0 0.0
        %859 = vmatpush1.msra.mxu0 0.0
        %860 = vmatprep.subr.mxu0 0.0
        %861 = vmatpush1.msra.mxu0 0.0
        %862 = vmatprep.subr.mxu0 0.0
        %863 = vmatpush1.msra.mxu0 0.0
        %864 = vmatprep.subr.mxu0 0.0
        %865 = vmatpush1.msra.mxu0 0.0
        %866 = vmatprep.subr.mxu0 0.0
        %867 = vmatpush1.msra.mxu0 0.0
        %868 = vmatprep.subr.mxu0 0.0
        %869 = vmatpush1.msra.mxu0 0.0
        %870 = vmatprep.subr.mxu0 0.0
        %871 = vmatpush1.msra.mxu0 0.0
        %872 = vmatprep.subr.mxu0 0.0
        %873 = vmatpush1.msra.mxu0 0.0
        %874 = vmatprep.subr.mxu0 0.0
        %875 = vmatpush1.msra.mxu0 0.0
        %876 = vmatprep.subr.mxu0 0.0
        %877 = vmatpush1.msra.mxu0 0.0
        %878 = vmatprep.subr.mxu0 0.0
        %879 = vmatpush1.msra.mxu0 0.0
        %880 = vmatprep.subr.mxu0 0.0
        %881 = vmatpush1.msra.mxu0 0.0
        %882 = vmatprep.subr.mxu0 0.0
        %883 = vmatpush1.msra.mxu0 0.0
        %884 = vmatprep.subr.mxu0 0.0
        %885 = vmatpush1.msra.mxu0 0.0
        %886 = vmatprep.subr.mxu0 0.0
        %887 = vmatpush1.msra.mxu0 0.0
        %888 = vmatprep.subr.mxu0 0.0
        %889 = vmatpush1.msra.mxu0 0.0
        %890 = vmatprep.subr.mxu0 0.0
        %891 = vmatpush1.msra.mxu0 0.0
        %892 = vmatprep.subr.mxu0 0.0
        %893 = vmatpush1.msra.mxu0 0.0
        %894 = vmatprep.subr.mxu0 0.0
        %895 = vmatpush1.msra.mxu0 0.0
        %896 = vmatprep.subr.mxu0 0.0
        %897 = vmatpush1.msra.mxu0 0.0
        %898 = vmatprep.subr.mxu0 0.0
        %899 = vmatpush1.msra.mxu0 0.0
        %900 = vmatprep.subr.mxu0 0.0
        %901 = vmatpush1.msra.mxu0 0.0
        %902 = vmatprep.subr.mxu0 0.0
        %903 = vmatpush1.msra.mxu0 0.0
        %904 = vmatprep.subr.mxu0 0.0
        %905 = vmatpush1.msra.mxu0 0.0
        %906 = vmatprep.subr.mxu0 0.0
        %907 = vmatpush1.msra.mxu0 0.0
        %908 = vmatprep.subr.mxu0 0.0
        %909 = vmatpush1.msra.mxu0 0.0
        %910 = vmatprep.subr.mxu0 0.0
        %911 = vmatpush1.msra.mxu0 0.0
        %912 = vmatprep.subr.mxu0 0.0
        %913 = vmatpush1.msra.mxu0 0.0
        %914 = vmatprep.subr.mxu0 0.0
        %915 = vmatpush1.msra.mxu0 0.0
        %916 = vmatprep.subr.mxu0 0.0
        %917 = vmatpush1.msra.mxu0 0.0
        %918 = vmatprep.subr.mxu0 0.0
        %919 = vmatpush1.msra.mxu0 0.0
        %920 = vmatprep.mubr.f32.mxu0 0.0
        %921 = vmatmul.mubr.f32.gmra.mrb[0].mxu0 %v854
        %v922 = vpop.f32.mrb[0].mxu0
        %v923 = vadd.f32 0.0, %v922
        %v924 = vpop.f32.mrb[0].mxu0
        %925 = vdwg.mxu0
        %v927 = vsel %vm757, %v768, 0
        %929 = vmatprep.subr.mxu0 0.0
        %930 = vmatpush1.msra.mxu0 %v686
        %931 = vmatprep.subr.mxu0 0.0
        %932 = vmatpush1.msra.mxu0 0.0
        %933 = vmatprep.subr.mxu0 0.0
        %934 = vmatpush1.msra.mxu0 0.0
        %935 = vmatprep.subr.mxu0 0.0
        %936 = vmatpush1.msra.mxu0 0.0
        %937 = vmatprep.subr.mxu0 0.0
        %938 = vmatpush1.msra.mxu0 0.0
        %939 = vmatprep.subr.mxu0 0.0
        %940 = vmatpush1.msra.mxu0 0.0
        %941 = vmatprep.subr.mxu0 0.0
        %942 = vmatpush1.msra.mxu0 0.0
        %943 = vmatprep.subr.mxu0 0.0
        %944 = vmatpush1.msra.mxu0 0.0
        %945 = vmatprep.subr.mxu0 0.0
        %946 = vmatpush1.msra.mxu0 0.0
        %947 = vmatprep.subr.mxu0 0.0
        %948 = vmatpush1.msra.mxu0 0.0
        %949 = vmatprep.subr.mxu0 0.0
        %950 = vmatpush1.msra.mxu0 0.0
        %951 = vmatprep.subr.mxu0 0.0
        %952 = vmatpush1.msra.mxu0 0.0
        %953 = vmatprep.subr.mxu0 0.0
        %954 = vmatpush1.msra.mxu0 0.0
        %955 = vmatprep.subr.mxu0 0.0
        %956 = vmatpush1.msra.mxu0 0.0
        %957 = vmatprep.subr.mxu0 0.0
        %958 = vmatpush1.msra.mxu0 0.0
        %959 = vmatprep.subr.mxu0 0.0
        %960 = vmatpush1.msra.mxu0 0.0
        %961 = vmatprep.subr.mxu0 0.0
        %962 = vmatpush1.msra.mxu0 0.0
        %963 = vmatprep.subr.mxu0 0.0
        %964 = vmatpush1.msra.mxu0 0.0
        %965 = vmatprep.subr.mxu0 0.0
        %966 = vmatpush1.msra.mxu0 0.0
        %967 = vmatprep.subr.mxu0 0.0
        %968 = vmatpush1.msra.mxu0 0.0
        %969 = vmatprep.subr.mxu0 0.0
        %970 = vmatpush1.msra.mxu0 0.0
        %971 = vmatprep.subr.mxu0 0.0
        %972 = vmatpush1.msra.mxu0 0.0
        %973 = vmatprep.subr.mxu0 0.0
        %974 = vmatpush1.msra.mxu0 0.0
        %975 = vmatprep.subr.mxu0 0.0
        %976 = vmatpush1.msra.mxu0 0.0
        %977 = vmatprep.subr.mxu0 0.0
        %978 = vmatpush1.msra.mxu0 0.0
        %979 = vmatprep.subr.mxu0 0.0
        %980 = vmatpush1.msra.mxu0 0.0
        %981 = vmatprep.subr.mxu0 0.0
        %982 = vmatpush1.msra.mxu0 0.0
        %983 = vmatprep.subr.mxu0 0.0
        %984 = vmatpush1.msra.mxu0 0.0
        %985 = vmatprep.subr.mxu0 0.0
        %986 = vmatpush1.msra.mxu0 0.0
        %987 = vmatprep.subr.mxu0 0.0
        %988 = vmatpush1.msra.mxu0 0.0
        %989 = vmatprep.subr.mxu0 0.0
        %990 = vmatpush1.msra.mxu0 0.0
        %991 = vmatprep.subr.mxu0 0.0
        %992 = vmatpush1.msra.mxu0 0.0
        %993 = vmatprep.mubr.f32.mxu0 0.0
        %994 = vmatmul.mubr.f32.gmra.mrb[0].mxu0 %v927
        %v995 = vpop.f32.mrb[0].mxu0
        %v996 = vadd.f32 %v923, %v995
        %v997 = vpop.f32.mrb[0].mxu0
        %998 = vdwg.mxu0
        %v999 = vld [vmem:[#allocation8] sm:$0xff]
        %v1000 = vld [vmem:[#allocation8 + $0x8] sm:$0xff]
        %v1001 = vld [vmem:[#allocation8 + $0x10] sm:$0xff]
        %v1002 = vld [vmem:[#allocation8 + $0x18] sm:$0xff]
        %v1003 = vld [vmem:[#allocation8 + $0x20] sm:$0xff]
        %v1004 = vld [vmem:[#allocation8 + $0x28] sm:$0xff]
        %v1005 = vld [vmem:[#allocation8 + $0x30] sm:$0xff]
        %v1006 = vld [vmem:[#allocation8 + $0x38] sm:$0xff]
        %v1007 = vld [vmem:[#allocation8 + $0x40] sm:$0xff]
        %v1008 = vld [vmem:[#allocation8 + $0x48] sm:$0xff]
        %v1009 = vld [vmem:[#allocation8 + $0x50] sm:$0xff]
        %v1010 = vld [vmem:[#allocation8 + $0x58] sm:$0xff]
        %v1011 = vld [vmem:[#allocation8 + $0x60] sm:$0xff]
        %v1012 = vld [vmem:[#allocation8 + $0x68] sm:$0xff]
        %v1013 = vld [vmem:[#allocation8 + $0x70] sm:$0xff]
        %v1014 = vld [vmem:[#allocation8 + $0x78] sm:$0xff]
        %1015 = vmatprep.subr.mxu0 0.0
        %1016 = vmatpush1.msra.mxu0 %v999
        %1017 = vmatprep.subr.mxu0 0.0
        %1018 = vmatpush1.msra.mxu0 %v1000
        %1019 = vmatprep.subr.mxu0 0.0
        %1020 = vmatpush1.msra.mxu0 %v1001
        %1021 = vmatprep.subr.mxu0 0.0
        %1022 = vmatpush1.msra.mxu0 %v1002
        %1023 = vmatprep.subr.mxu0 0.0
        %1024 = vmatpush1.msra.mxu0 %v1003
        %1025 = vmatprep.subr.mxu0 0.0
        %1026 = vmatpush1.msra.mxu0 %v1004
        %1027 = vmatprep.subr.mxu0 0.0
        %1028 = vmatpush1.msra.mxu0 %v1005
        %1029 = vmatprep.subr.mxu0 0.0
        %1030 = vmatpush1.msra.mxu0 %v1006
        %1031 = vmatprep.subr.mxu0 0.0
        %1032 = vmatpush1.msra.mxu0 %v1007
        %1033 = vmatprep.subr.mxu0 0.0
        %1034 = vmatpush1.msra.mxu0 %v1008
        %1035 = vmatprep.subr.mxu0 0.0
        %1036 = vmatpush1.msra.mxu0 %v1009
        %1037 = vmatprep.subr.mxu0 0.0
        %1038 = vmatpush1.msra.mxu0 %v1010
        %1039 = vmatprep.subr.mxu0 0.0
        %1040 = vmatpush1.msra.mxu0 %v1011
        %1041 = vmatprep.subr.mxu0 0.0
        %1042 = vmatpush1.msra.mxu0 %v1012
        %1043 = vmatprep.subr.mxu0 0.0
        %1044 = vmatpush1.msra.mxu0 %v1013
        %1045 = vmatprep.subr.mxu0 0.0
        %1046 = vmatpush1.msra.mxu0 %v1014
        %1047 = vmatprep.subr.mxu0 0.0
        %1048 = vmatpush1.msra.mxu0 0.0
        %1049 = vmatprep.subr.mxu0 0.0
        %1050 = vmatpush1.msra.mxu0 0.0
        %1051 = vmatprep.subr.mxu0 0.0
        %1052 = vmatpush1.msra.mxu0 0.0
        %1053 = vmatprep.subr.mxu0 0.0
        %1054 = vmatpush1.msra.mxu0 0.0
        %1055 = vmatprep.subr.mxu0 0.0
        %1056 = vmatpush1.msra.mxu0 0.0
        %1057 = vmatprep.subr.mxu0 0.0
        %1058 = vmatpush1.msra.mxu0 0.0
        %1059 = vmatprep.subr.mxu0 0.0
        %1060 = vmatpush1.msra.mxu0 0.0
        %1061 = vmatprep.subr.mxu0 0.0
        %1062 = vmatpush1.msra.mxu0 0.0
        %1063 = vmatprep.subr.mxu0 0.0
        %1064 = vmatpush1.msra.mxu0 0.0
        %1065 = vmatprep.subr.mxu0 0.0
        %1066 = vmatpush1.msra.mxu0 0.0
        %1067 = vmatprep.subr.mxu0 0.0
        %1068 = vmatpush1.msra.mxu0 0.0
        %1069 = vmatprep.subr.mxu0 0.0
        %1070 = vmatpush1.msra.mxu0 0.0
        %1071 = vmatprep.subr.mxu0 0.0
        %1072 = vmatpush1.msra.mxu0 0.0
        %1073 = vmatprep.subr.mxu0 0.0
        %1074 = vmatpush1.msra.mxu0 0.0
        %1075 = vmatprep.subr.mxu0 0.0
        %1076 = vmatpush1.msra.mxu0 0.0
        %1077 = vmatprep.subr.mxu0 0.0
        %1078 = vmatpush1.msra.mxu0 0.0
        %1079 = vmatprep.mubr.f32.mxu0 0.0
        %1080 = vmatmul.mubr.f32.gmra.mrb[0].mxu0 %v996
        %v1081 = vpop.f32.mrb[0].mxu0
        %v1082 = vadd.f32 %v381, %v1081
        %v1083 = vpop.f32.mrb[0].mxu0
        %1084 = vdwg.mxu0
        %v1085 = vadd.f32 %v476, %v1082
        %1086 = vadd.xlane.f32.xlu0 %v1085
        %v1087 = vpop.xlane.xlu0 %1086
        %v1088 = vmul.f32 %v1087, 0.0125
        %v1089 = vsub.f32 %v1085, %v1088
        %v1090 = vmul.f32 %v1089, %v387
        %v1091 = vmul.f32 %v1090, %v1090
        %1092 = vadd.xlane.f32.xlu0 %v1091
        %v1093 = vpop.xlane.xlu0 %1092
        %v1094 = vmul.f32 %v1093, 0.0125
        %v1095 = vadd.f32 %v1094, 1e-05
        %v1096 = vrsqrt.pop %v1095
        %v1097 = vmul.f32 %v1090, %v1096
        %v1098 = vmul.f32 %v1097, %v382
        %v1099 = vadd.f32 %v1098, %v383
        %v1100 = vld [vmem:[#allocation10] sm:$0xff]
        %v1101 = vld [vmem:[#allocation10 + $0x8] sm:$0xff]
        %v1102 = vld [vmem:[#allocation10 + $0x10] sm:$0xff]
        %v1103 = vld [vmem:[#allocation10 + $0x18] sm:$0xff]
        %v1104 = vld [vmem:[#allocation10 + $0x20] sm:$0xff]
        %v1105 = vld [vmem:[#allocation10 + $0x28] sm:$0xff]
        %v1106 = vld [vmem:[#allocation10 + $0x30] sm:$0xff]
        %v1107 = vld [vmem:[#allocation10 + $0x38] sm:$0xff]
        %v1108 = vld [vmem:[#allocation10 + $0x40] sm:$0xff]
        %v1109 = vld [vmem:[#allocation10 + $0x48] sm:$0xff]
        %v1110 = vld [vmem:[#allocation10 + $0x50] sm:$0xff]
        %v1111 = vld [vmem:[#allocation10 + $0x58] sm:$0xff]
        %v1112 = vld [vmem:[#allocation10 + $0x60] sm:$0xff]
        %v1113 = vld [vmem:[#allocation10 + $0x68] sm:$0xff]
        %v1114 = vld [vmem:[#allocation10 + $0x70] sm:$0xff]
        %v1115 = vld [vmem:[#allocation10 + $0x78] sm:$0xff]
        %v1116 = vld [vmem:[#allocation10 + $0x80] sm:$0xff]
        %v1117 = vld [vmem:[#allocation10 + $0x88] sm:$0xff]
        %v1118 = vld [vmem:[#allocation10 + $0x90] sm:$0xff]
        %v1119 = vld [vmem:[#allocation10 + $0x98] sm:$0xff]
        %v1120 = vld [vmem:[#allocation10 + $0xa0] sm:$0xff]
        %v1121 = vld [vmem:[#allocation10 + $0xa8] sm:$0xff]
        %v1122 = vld [vmem:[#allocation10 + $0xb0] sm:$0xff]
        %v1123 = vld [vmem:[#allocation10 + $0xb8] sm:$0xff]
        %v1124 = vld [vmem:[#allocation10 + $0xc0] sm:$0xff]
        %v1125 = vld [vmem:[#allocation10 + $0xc8] sm:$0xff]
        %v1126 = vld [vmem:[#allocation10 + $0xd0] sm:$0xff]
        %v1127 = vld [vmem:[#allocation10 + $0xd8] sm:$0xff]
        %v1128 = vld [vmem:[#allocation10 + $0xe0] sm:$0xff]
        %v1129 = vld [vmem:[#allocation10 + $0xe8] sm:$0xff]
        %v1130 = vld [vmem:[#allocation10 + $0xf0] sm:$0xff]
        %v1131 = vld [vmem:[#allocation10 + $0xf8] sm:$0xff]
        %v1133 = vlaneseq
        %v1134 = vshrl.u32 %v1133, 7
        %v1135 = vsub.s32 0, %v1134
        %v1136 = vrot.slane %v389, %v1135
        %v1137 = vlaneseq
        %v1138 = vshrl.u32 %v1137, 7
        %v1139 = vsub.s32 1, %v1138
        %v1140 = vrot.slane %v389, %v1139
        %1143 = vmatprep.subr.mxu0 %v1101
        %1144 = vmatpush1.msra.mxu0 %v1100
        %1145 = vmatprep.subr.mxu0 %v1103
        %1146 = vmatpush1.msra.mxu0 %v1102
        %1147 = vmatprep.subr.mxu0 %v1105
        %1148 = vmatpush1.msra.mxu0 %v1104
        %1149 = vmatprep.subr.mxu0 %v1107
        %1150 = vmatpush1.msra.mxu0 %v1106
        %1151 = vmatprep.subr.mxu0 %v1109
        %1152 = vmatpush1.msra.mxu0 %v1108
        %1153 = vmatprep.subr.mxu0 %v1111
        %1154 = vmatpush1.msra.mxu0 %v1110
        %1155 = vmatprep.subr.mxu0 %v1113
        %1156 = vmatpush1.msra.mxu0 %v1112
        %1157 = vmatprep.subr.mxu0 %v1115
        %1158 = vmatpush1.msra.mxu0 %v1114
        %1159 = vmatprep.subr.mxu0 %v1117
        %1160 = vmatpush1.msra.mxu0 %v1116
        %1161 = vmatprep.subr.mxu0 %v1119
        %1162 = vmatpush1.msra.mxu0 %v1118
        %1163 = vmatprep.subr.mxu0 %v1121
        %1164 = vmatpush1.msra.mxu0 %v1120
        %1165 = vmatprep.subr.mxu0 %v1123
        %1166 = vmatpush1.msra.mxu0 %v1122
        %1167 = vmatprep.subr.mxu0 %v1125
        %1168 = vmatpush1.msra.mxu0 %v1124
        %1169 = vmatprep.subr.mxu0 %v1127
        %1170 = vmatpush1.msra.mxu0 %v1126
        %1171 = vmatprep.subr.mxu0 %v1129
        %1172 = vmatpush1.msra.mxu0 %v1128
        %1173 = vmatprep.subr.mxu0 %v1131
        %1174 = vmatpush1.msra.mxu0 %v1130
        %1175 = vmatprep.subr.mxu0 0.0
        %1176 = vmatpush1.msra.mxu0 0.0
        %1177 = vmatprep.subr.mxu0 0.0
        %1178 = vmatpush1.msra.mxu0 0.0
        %1179 = vmatprep.subr.mxu0 0.0
        %1180 = vmatpush1.msra.mxu0 0.0
        %1181 = vmatprep.subr.mxu0 0.0
        %1182 = vmatpush1.msra.mxu0 0.0
        %1183 = vmatprep.subr.mxu0 0.0
        %1184 = vmatpush1.msra.mxu0 0.0
        %1185 = vmatprep.subr.mxu0 0.0
        %1186 = vmatpush1.msra.mxu0 0.0
        %1187 = vmatprep.subr.mxu0 0.0
        %1188 = vmatpush1.msra.mxu0 0.0
        %1189 = vmatprep.subr.mxu0 0.0
        %1190 = vmatpush1.msra.mxu0 0.0
        %1191 = vmatprep.subr.mxu0 0.0
        %1192 = vmatpush1.msra.mxu0 0.0
        %1193 = vmatprep.subr.mxu0 0.0
        %1194 = vmatpush1.msra.mxu0 0.0
        %1195 = vmatprep.subr.mxu0 0.0
        %1196 = vmatpush1.msra.mxu0 0.0
        %1197 = vmatprep.subr.mxu0 0.0
        %1198 = vmatpush1.msra.mxu0 0.0
        %1199 = vmatprep.subr.mxu0 0.0
        %1200 = vmatpush1.msra.mxu0 0.0
        %1201 = vmatprep.subr.mxu0 0.0
        %1202 = vmatpush1.msra.mxu0 0.0
        %1203 = vmatprep.subr.mxu0 0.0
        %1204 = vmatpush1.msra.mxu0 0.0
        %1205 = vmatprep.subr.mxu0 0.0
        %1206 = vmatpush1.msra.mxu0 0.0
        %1207 = vmatprep.mubr.f32.mxu0 0.0
        %1208 = vmatmul.mubr.f32.gmra.mrb[0].mxu0 %v1099
        %v1209 = vpop.f32.mrb[0].mxu0
        %v1210 = vadd.f32 %v1136, %v1209
        %v1211 = vpop.f32.mrb[0].mxu0
        %v1212 = vadd.f32 %v1140, %v1211
        %1213 = vdwg.mxu0
        %v1214 = vmax.f32 %v1210, 0.0
        %v1215 = vmax.f32 %v1212, 0.0
        %v1216 = vld [vmem:[#allocation11] sm:$0xff]
        %v1217 = vld [vmem:[#allocation11 + $0x8] sm:$0xff]
        %v1218 = vld [vmem:[#allocation11 + $0x10] sm:$0xff]
        %v1219 = vld [vmem:[#allocation11 + $0x18] sm:$0xff]
        %v1220 = vld [vmem:[#allocation11 + $0x20] sm:$0xff]
        %v1221 = vld [vmem:[#allocation11 + $0x28] sm:$0xff]
        %v1222 = vld [vmem:[#allocation11 + $0x30] sm:$0xff]
        %v1223 = vld [vmem:[#allocation11 + $0x38] sm:$0xff]
        %v1224 = vld [vmem:[#allocation11 + $0x40] sm:$0xff]
        %v1225 = vld [vmem:[#allocation11 + $0x48] sm:$0xff]
        %v1226 = vld [vmem:[#allocation11 + $0x50] sm:$0xff]
        %v1227 = vld [vmem:[#allocation11 + $0x58] sm:$0xff]
        %v1228 = vld [vmem:[#allocation11 + $0x60] sm:$0xff]
        %v1229 = vld [vmem:[#allocation11 + $0x68] sm:$0xff]
        %v1230 = vld [vmem:[#allocation11 + $0x70] sm:$0xff]
        %v1231 = vld [vmem:[#allocation11 + $0x78] sm:$0xff]
        %v1232 = vld [vmem:[#allocation11 + $0x80] sm:$0xff]
        %v1233 = vld [vmem:[#allocation11 + $0x88] sm:$0xff]
        %v1234 = vld [vmem:[#allocation11 + $0x90] sm:$0xff]
        %v1235 = vld [vmem:[#allocation11 + $0x98] sm:$0xff]
        %v1236 = vld [vmem:[#allocation11 + $0xa0] sm:$0xff]
        %v1237 = vld [vmem:[#allocation11 + $0xa8] sm:$0xff]
        %v1238 = vld [vmem:[#allocation11 + $0xb0] sm:$0xff]
        %v1239 = vld [vmem:[#allocation11 + $0xb8] sm:$0xff]
        %v1240 = vld [vmem:[#allocation11 + $0xc0] sm:$0xff]
        %v1241 = vld [vmem:[#allocation11 + $0xc8] sm:$0xff]
        %v1242 = vld [vmem:[#allocation11 + $0xd0] sm:$0xff]
        %v1243 = vld [vmem:[#allocation11 + $0xd8] sm:$0xff]
        %v1244 = vld [vmem:[#allocation11 + $0xe0] sm:$0xff]
        %v1245 = vld [vmem:[#allocation11 + $0xe8] sm:$0xff]
        %v1246 = vld [vmem:[#allocation11 + $0xf0] sm:$0xff]
        %v1247 = vld [vmem:[#allocation11 + $0xf8] sm:$0xff]
        %1248 = vmatprep.subr.mxu0 0.0
        %1249 = vmatpush1.msra.mxu0 %v1216
        %1250 = vmatprep.subr.mxu0 0.0
        %1251 = vmatpush1.msra.mxu0 %v1217
        %1252 = vmatprep.subr.mxu0 0.0
        %1253 = vmatpush1.msra.mxu0 %v1218
        %1254 = vmatprep.subr.mxu0 0.0
        %1255 = vmatpush1.msra.mxu0 %v1219
        %1256 = vmatprep.subr.mxu0 0.0
        %1257 = vmatpush1.msra.mxu0 %v1220
        %1258 = vmatprep.subr.mxu0 0.0
        %1259 = vmatpush1.msra.mxu0 %v1221
        %1260 = vmatprep.subr.mxu0 0.0
        %1261 = vmatpush1.msra.mxu0 %v1222
        %1262 = vmatprep.subr.mxu0 0.0
        %1263 = vmatpush1.msra.mxu0 %v1223
        %1264 = vmatprep.subr.mxu0 0.0
        %1265 = vmatpush1.msra.mxu0 %v1224
        %1266 = vmatprep.subr.mxu0 0.0
        %1267 = vmatpush1.msra.mxu0 %v1225
        %1268 = vmatprep.subr.mxu0 0.0
        %1269 = vmatpush1.msra.mxu0 %v1226
        %1270 = vmatprep.subr.mxu0 0.0
        %1271 = vmatpush1.msra.mxu0 %v1227
        %1272 = vmatprep.subr.mxu0 0.0
        %1273 = vmatpush1.msra.mxu0 %v1228
        %1274 = vmatprep.subr.mxu0 0.0
        %1275 = vmatpush1.msra.mxu0 %v1229
        %1276 = vmatprep.subr.mxu0 0.0
        %1277 = vmatpush1.msra.mxu0 %v1230
        %1278 = vmatprep.subr.mxu0 0.0
        %1279 = vmatpush1.msra.mxu0 %v1231
        %1280 = vmatprep.subr.mxu0 0.0
        %1281 = vmatpush1.msra.mxu0 %v1232
        %1282 = vmatprep.subr.mxu0 0.0
        %1283 = vmatpush1.msra.mxu0 %v1233
        %1284 = vmatprep.subr.mxu0 0.0
        %1285 = vmatpush1.msra.mxu0 %v1234
        %1286 = vmatprep.subr.mxu0 0.0
        %1287 = vmatpush1.msra.mxu0 %v1235
        %1288 = vmatprep.subr.mxu0 0.0
        %1289 = vmatpush1.msra.mxu0 %v1236
        %1290 = vmatprep.subr.mxu0 0.0
        %1291 = vmatpush1.msra.mxu0 %v1237
        %1292 = vmatprep.subr.mxu0 0.0
        %1293 = vmatpush1.msra.mxu0 %v1238
        %1294 = vmatprep.subr.mxu0 0.0
        %1295 = vmatpush1.msra.mxu0 %v1239
        %1296 = vmatprep.subr.mxu0 0.0
        %1297 = vmatpush1.msra.mxu0 %v1240
        %1298 = vmatprep.subr.mxu0 0.0
        %1299 = vmatpush1.msra.mxu0 %v1241
        %1300 = vmatprep.subr.mxu0 0.0
        %1301 = vmatpush1.msra.mxu0 %v1242
        %1302 = vmatprep.subr.mxu0 0.0
        %1303 = vmatpush1.msra.mxu0 %v1243
        %1304 = vmatprep.subr.mxu0 0.0
        %1305 = vmatpush1.msra.mxu0 %v1244
        %1306 = vmatprep.subr.mxu0 0.0
        %1307 = vmatpush1.msra.mxu0 %v1245
        %1308 = vmatprep.subr.mxu0 0.0
        %1309 = vmatpush1.msra.mxu0 %v1246
        %1310 = vmatprep.subr.mxu0 0.0
        %1311 = vmatpush1.msra.mxu0 %v1247
        %1312 = vmatprep.mubr.f32.mxu0 %v1215
        %1313 = vmatmul.mubr.f32.gmra.mrb[0].mxu0 %v1214
        %v1314 = vpop.f32.mrb[0].mxu0
        %v1315 = vadd.f32 %v384, %v1314
        %v1316 = vpop.f32.mrb[0].mxu0
        %1317 = vdwg.mxu0
        %v1318 = vadd.f32 %v1099, %v1315
        %1319 = vadd.xlane.f32.xlu0 %v1318
        %v1320 = vpop.xlane.xlu0 %1319
        %v1321 = vmul.f32 %v1320, 0.0125
        %v1322 = vsub.f32 %v1318, %v1321
        %v1323 = vmul.f32 %v1322, %v387
        %v1324 = vmul.f32 %v1323, %v1323
        %1325 = vadd.xlane.f32.xlu0 %v1324
        %v1326 = vpop.xlane.xlu0 %1325
        %v1327 = vmul.f32 %v1326, 0.0125
        %v1328 = vadd.f32 %v1327, 1e-05
        %v1329 = vrsqrt.pop %v1328
        %v1330 = vmul.f32 %v1323, %v1329
        %v1331 = vmul.f32 %v1330, %v385
        %v1332 = vadd.f32 %v1331, %v386
        %v1333 = vrot.slane %v1332, 4
        %v1334 = vadd.f32 %v1332, %v1333
        %v1335 = vrot.slane %v1334, 2
        %v1336 = vadd.f32 %v1334, %v1335
        %v1337 = vrot.slane %v1336, 1
        %v1338 = vadd.f32 %v1336, %v1337
        %v1339 = vmul.f32 %v1338, 0.125
        %1340 = vst [vmem:[%s379] sm:$0x1] %v1339
        %s1341 = sand.u32 %s187, 1
        %s1342 = scalar_lea.sflag [#allocation4], %s1341
        %s1343 = sand.u32 %s187, 1
        %s1344 = scalar_lea.vmem [#allocation14], %s1343
        // Predicated region
        $region77: #{tpu_custom_call.1} parent=47 // pred_check
          %p1345 = pneg %p197
        $region78: #{tpu_custom_call.1} parent=47 // pred_check_branch
          %1347 = sbr.rel (%p1345) target = $region80
        $region79: #{tpu_custom_call.1} parent=47 // pred_region
          %s1349 = ssub.s32 16, 16
          %1350 = vsyncadd %s1342, %s1349
          %s1351 = smul.addr %s27, 16
          %s1352 = scalar_lea.hbm %s7, %s1351
          %s1354 = sshll.u32 %s1344, 4
          %s1355 = int_to_ptr.vmem [resolvable:$true] %s1354
          %1357 = dma.vmem_to_hbm [thread:$0]  %s1355, 16, %s1352, %s1342
        $region80: #{tpu_custom_call.1} parent=47 // pred_fallthru
          _
      $region48: #{tpu_custom_call.1} parent=5 // pred_fallthru
        _
      %p1358 = scmp.le.s32.totalorder 2, %s22
      // Predicated region
      $region81: #{tpu_custom_call.1} parent=5 // pred_check
        %p1359 = pneg %p1358
      $region82: #{tpu_custom_call.1} parent=5 // pred_check_branch
        %1361 = sbr.rel (%p1359) target = $region84
      $region83: #{tpu_custom_call.1} parent=5 // pred_region
        %s1362 = ssub.s32 %s22, 2
        // Predicated region
        $region85: #{tpu_custom_call.1} parent=83 // pred_check
          %p1363 = pneg %p203
        $region86: #{tpu_custom_call.1} parent=83 // pred_check_branch
          %1365 = sbr.rel (%p1363) target = $region88
        $region87: #{tpu_custom_call.1} parent=83 // pred_region
          %s1366 = sand.u32 %s188, 1
          %s1367 = scalar_lea.sflag [#allocation4], %s1366
          %s1368 = sand.u32 %s188, 1
          %s1369 = scalar_lea.vmem [#allocation14], %s1368
          %1370 = dma.done %s1367, 16
        $region88: #{tpu_custom_call.1} parent=83 // pred_fallthru
          _
      $region84: #{tpu_custom_call.1} parent=5 // pred_fallthru
        _
    $region6: #{tpu_custom_call.1} parent=1 // loop_footer
      %s26 = sadd.s32 1, %s22
    $region7: #{tpu_custom_call.1} parent=1 // loop_footer_branch
      %21 = sbr.rel target = $region3
    $region8: #{tpu_custom_call.1} parent=1 // loop_exit
      _
    %1371 = vsyncpa [#allocation3], 1
    %s1372 = scalar_lea.sflag [#allocation3], 1
    %1373 = vsyncpa %s1372, 1
    %1374 = vsyncpa [#allocation6], 1
    %1375 = vsyncpa [#allocation9], 1
    %1376 = vsyncpa [#allocation12], 1
    %1377 = vsyncpa [#allocation4], 1
    %s1378 = scalar_lea.sflag [#allocation4], 1
    %1379 = vsyncpa %s1378, 1

</llo_original>
